<compile_context>
chip_gen: v7x
topology: tpu7x:2x2x1
jax: 0.10.0
libtpu: 0.0.40
codegen_flags: <defaults>
</compile_context>

<pallas_src>
import functools

import jax
import jax.numpy as jnp
import numpy as np
from jax import lax
from jax.experimental import pallas as pl
from jax.experimental.pallas import tpu as pltpu

EPS = 1e-5          # torch.nn.GroupNorm default eps
CH_ALIGN = 16       # channel padding: one bf16 sublane tile (16 rows)


def _round_up(n, m):
    return ((n + m - 1) // m) * m


# ----------------------------- in-kernel helpers --------------------------- #

def _gn_swish(x, gamma, beta, memb, inv_n):
    """GroupNorm (biased var, eps=1e-5) + Swish, channels-first.

    x: (Cp, HW) f32, gamma/beta: (Cp, 1) f32 (zero on pad channels),
    memb: (Cp, G) f32 one-hot group membership (zero rows on pad channels),
    inv_n: python float 1 / (group_size * HW).

    Statistics: lane (XLU) reduce first, then a tiny per-group segment sum via
    broadcast multiplies + sublane reduce — no MXU work, pure-f32 two-pass.
    """
    colsum = jnp.sum(x, axis=-1, keepdims=True)                     # (Cp, 1)
    gsum = jnp.sum(colsum * memb, axis=0, keepdims=True)            # (1, G)
    mean = jnp.sum(gsum * memb, axis=-1, keepdims=True) * inv_n     # (Cp, 1)
    xc = x - mean
    csum2 = jnp.sum(xc * xc, axis=-1, keepdims=True)                # (Cp, 1)
    gsum2 = jnp.sum(csum2 * memb, axis=0, keepdims=True)            # (1, G)
    var = jnp.sum(gsum2 * memb, axis=-1, keepdims=True) * inv_n     # (Cp, 1)
    y = xc * lax.rsqrt(var + EPS) * gamma + beta
    return y * jax.nn.sigmoid(y)                                    # Swish


def _conv_taps(a, H, W):
    """9 shifted taps of a (Cp, H*W) f32 activation for a 3x3 'same' conv.

    Returns a list of 9 bf16 (Cp, H*W) arrays, tap order t = kh*3 + kw.
    Shifts are static lane slices of a zero-padded copy (zero fill handles the
    vertical borders); horizontal borders are handled by pre-masking the
    source once per kw, so no per-tap masking and no circular wrap-around.
    The f32->bf16 cast happens once per kw group (3 casts), not once per tap.
    """
    Cp, HW = a.shape
    P = W + 1                                      # covers every |di*W + dj|
    col = lax.broadcasted_iota(jnp.int32, (1, HW), 1) % W
    zpad = jnp.zeros((Cp, P), jnp.float32)
    padded = {}
    for dj, mask in ((-1, col <= W - 2), (0, None), (1, col >= 1)):
        v = a if mask is None else jnp.where(mask, a, 0.0)
        padded[dj] = jnp.concatenate([zpad, v, zpad],
                                     axis=-1).astype(jnp.bfloat16)  # (Cp, HW+2P)
    taps = []
    for di in (-1, 0, 1):
        for dj in (-1, 0, 1):
            off = P + di * W + dj
            taps.append(padded[dj][:, off:off + HW])
    return taps


# ------------------------------- fused kernel ------------------------------ #

def resnet_block_kernel(x_ref, m1_ref, g1_ref, b1_ref, w1_ref, cb1_ref,
                        noise_ref, m2_ref, g2_ref, b2_ref, w2_ref, cb2_ref,
                        o_ref, *, H, W, inv_n1, inv_n2):
    """Fused SR3 ResnetBlock forward for one batch sample.

    Both 3x3 convs are a single big-K bf16 MXU matmul (taps stacked along the
    contraction dim); the 1x1 residual conv rides along in block2's matmul
    (its weight / bias are appended to w2 / cb2 in the wrapper).
    """
    x = x_ref[0]                                                    # (Cinp, HW) f32

    # ---- block1: GN + Swish + Conv3x3 + per-channel noise ---- #
    a1 = _gn_swish(x, g1_ref[...], b1_ref[...], m1_ref[...], inv_n1)
    t1 = jnp.concatenate(_conv_taps(a1, H, W), axis=0)              # (9*Cinp, HW) bf16
    h = (jnp.dot(w1_ref[...], t1, preferred_element_type=jnp.float32)
         + cb1_ref[...] + noise_ref[0])                             # (Coutp, HW) f32

    # ---- block2: GN + Swish + Conv3x3 + fused 1x1 residual ---- #
    a2 = _gn_swish(h, g2_ref[...], b2_ref[...], m2_ref[...], inv_n2)
    t2 = jnp.concatenate(_conv_taps(a2, H, W) + [x.astype(jnp.bfloat16)],
                         axis=0)                                    # (9*Coutp+Cinp, HW)
    out = (jnp.dot(w2_ref[...], t2, preferred_element_type=jnp.float32)
           + cb2_ref[...])
    o_ref[0] = out.astype(o_ref.dtype)


# ------------------------------- wrapper (JAX) ------------------------------ #

def _pad_axis(a, target, axis):
    pad = target - a.shape[axis]
    if pad == 0:
        return a
    widths = [(0, 0)] * a.ndim
    widths[axis] = (0, pad)
    return jnp.pad(a, widths)


def _membership(c_real, c_pad, groups):
    """(c_pad, groups) f32 one-hot group membership; zero rows on pad channels."""
    cg = c_real // groups
    m = np.zeros((c_pad, groups), np.float32)
    rows = np.arange(c_real)
    m[rows, rows // cg] = 1.0
    return jnp.asarray(m)


def _stack_conv3x3_weight(w, cin_pad, cout_pad):
    """(O, I, 3, 3) -> (cout_pad, 9*cin_pad) bf16, tap order t = kh*3 + kw."""
    O, I = w.shape[0], w.shape[1]
    ws = jnp.transpose(w, (0, 2, 3, 1)).reshape(O, 9, I)            # [o, kh*3+kw, i]
    ws = _pad_axis(ws, cin_pad, 2).reshape(O, 9 * cin_pad)
    ws = _pad_axis(ws, cout_pad, 0)
    return ws.astype(jnp.bfloat16)


def _vmem_limit_bytes():
    """Generation-aware VMEM limit: ~3/4 of physical, capped at 100 MiB."""
    cap = 64 * 1024 * 1024            # conservative fallback (v7x physical)
    try:
        cap = int(getattr(pltpu.get_tpu_info(), "vmem_capacity_bytes", cap))
    except Exception:
        pass
    return int(min(cap * 3 // 4, 100 * 1024 * 1024))


def resnet_block_forward(params, x_nchw, time_emb, *, groups):
    B, C, H, W = x_nchw.shape
    HW = H * W
    Cout = params["conv1_w"].shape[0]
    Cinp = _round_up(C, CH_ALIGN)
    Coutp = _round_up(Cout, CH_ALIGN)
    G = groups

    x_flat = _pad_axis(x_nchw.reshape(B, C, HW).astype(jnp.float32), Cinp, 1)

    # FeatureWiseAffine (use_affine_level=False): tiny Linear, plain jnp.
    noise = (time_emb.astype(jnp.float32) @ params["noise_w"].T.astype(jnp.float32)
             + params["noise_b"].astype(jnp.float32))               # (B, Cout)
    noise = _pad_axis(noise, Coutp, 1).reshape(B, Coutp, 1)

    # ---- block1 params ---- #
    m1 = _membership(C, Cinp, G)
    g1 = _pad_axis(params["gn1_w"].astype(jnp.float32), Cinp, 0).reshape(Cinp, 1)
    be1 = _pad_axis(params["gn1_b"].astype(jnp.float32), Cinp, 0).reshape(Cinp, 1)
    w1 = _stack_conv3x3_weight(params["conv1_w"], Cinp, Coutp)      # (Coutp, 9*Cinp)
    cb1 = _pad_axis(params["conv1_b"].astype(jnp.float32), Coutp, 0).reshape(Coutp, 1)

    # ---- block2 params (1x1 residual conv fused into the weight / bias) ---- #
    m2 = _membership(Cout, Coutp, G)
    g2 = _pad_axis(params["gn2_w"].astype(jnp.float32), Coutp, 0).reshape(Coutp, 1)
    be2 = _pad_axis(params["gn2_b"].astype(jnp.float32), Coutp, 0).reshape(Coutp, 1)
    w2 = _stack_conv3x3_weight(params["conv2_w"], Coutp, Coutp)     # (Coutp, 9*Coutp)
    wres = _pad_axis(_pad_axis(params["res_w"].reshape(Cout, C), Cinp, 1),
                     Coutp, 0).astype(jnp.bfloat16)                 # (Coutp, Cinp)
    w2 = jnp.concatenate([w2, wres], axis=1)                        # (Coutp, 9*Coutp+Cinp)
    cb2 = _pad_axis((params["conv2_b"] + params["res_b"]).astype(jnp.float32),
                    Coutp, 0).reshape(Coutp, 1)

    kernel = functools.partial(resnet_block_kernel, H=H, W=W,
                               inv_n1=1.0 / float((C // G) * HW),
                               inv_n2=1.0 / float((Cout // G) * HW))

    flops = 2 * B * HW * (9 * Cinp * Coutp + (9 * Coutp + Cinp) * Coutp)
    bytes_accessed = int(sum(int(np.prod(a.shape)) * a.dtype.itemsize for a in
                             (x_flat, m1, g1, be1, w1, cb1, noise, m2, g2, be2,
                              w2, cb2)) + B * Coutp * HW * 4)
    cost = pl.CostEstimate(flops=int(flops),
                           transcendentals=int(B * HW * (Cinp + Coutp)),
                           bytes_accessed=bytes_accessed)

    out = pl.pallas_call(
        kernel,
        out_shape=jax.ShapeDtypeStruct((B, Coutp, HW), jnp.float32),
        grid=(B,),   # keep B even so both v7x TensorCores get parallel work
        in_specs=[
            pl.BlockSpec((1, Cinp, HW), lambda b: (b, 0, 0)),           # x
            pl.BlockSpec((Cinp, G), lambda b: (0, 0)),                  # memb1
            pl.BlockSpec((Cinp, 1), lambda b: (0, 0)),                  # gn1 gamma
            pl.BlockSpec((Cinp, 1), lambda b: (0, 0)),                  # gn1 beta
            pl.BlockSpec((Coutp, 9 * Cinp), lambda b: (0, 0)),          # conv1 w (stacked)
            pl.BlockSpec((Coutp, 1), lambda b: (0, 0)),                 # conv1 bias
            pl.BlockSpec((1, Coutp, 1), lambda b: (b, 0, 0)),           # noise
            pl.BlockSpec((Coutp, G), lambda b: (0, 0)),                 # memb2
            pl.BlockSpec((Coutp, 1), lambda b: (0, 0)),                 # gn2 gamma
            pl.BlockSpec((Coutp, 1), lambda b: (0, 0)),                 # gn2 beta
            pl.BlockSpec((Coutp, 9 * Coutp + Cinp), lambda b: (0, 0)),  # conv2|res w
            pl.BlockSpec((Coutp, 1), lambda b: (0, 0)),                 # conv2+res bias
        ],
        out_specs=pl.BlockSpec((1, Coutp, HW), lambda b: (b, 0, 0)),
        compiler_params=pltpu.CompilerParams(
            dimension_semantics=("parallel",),
            vmem_limit_bytes=_vmem_limit_bytes()),
        cost_estimate=cost,
    )(x_flat, m1, g1, be1, w1, cb1, noise, m2, g2, be2, w2, cb2)

    if Coutp != Cout:
        out = out[:, :Cout, :]
    return out.reshape(B, Cout, H, W)                               # already NCHW


# -------------------------- pure-JAX reference ----------------------------- #

def ref_forward(params, x, t, groups):
    def gn(x, w, b, G):
        B, C, H, W = x.shape
        xg = x.reshape(B, G, -1)
        m = xg.mean(axis=2, keepdims=True)
        v = ((xg - m) ** 2).mean(axis=2, keepdims=True)
        xn = ((xg - m) / jnp.sqrt(v + EPS)).reshape(B, C, H, W)
        return xn * w[None, :, None, None] + b[None, :, None, None]

    def swish(x):
        return x * jax.nn.sigmoid(x)

    def conv(x, w, b, pad):
        y = lax.conv_general_dilated(x, w, (1, 1), [(pad, pad), (pad, pad)],
                                     dimension_numbers=("NCHW", "OIHW", "NCHW"))
        return y + b[None, :, None, None]

    h = conv(swish(gn(x, params["gn1_w"], params["gn1_b"], groups)),
             params["conv1_w"], params["conv1_b"], 1)
    h = h + (t @ params["noise_w"].T + params["noise_b"])[:, :, None, None]
    h = conv(swish(gn(h, params["gn2_w"], params["gn2_b"], groups)),
             params["conv2_w"], params["conv2_b"], 1)
    return h + conv(x, params["res_w"], params["res_b"], 0)


# ---------------------------------- main ----------------------------------- #

if __name__ == "__main__":
    B, C, Cout, H, W = 2, 4, 8, 16, 16     # dim=4, dim_out=8
    E = 32                                  # noise_level_emb_dim
    groups = 2                              # norm_groups (divides dim, dim_out)

    ks = jax.random.split(jax.random.PRNGKey(0), 14)
    params = {
        "noise_w":  0.1 * jax.random.normal(ks[0],  (Cout, E), jnp.float32),
        "noise_b":  0.1 * jax.random.normal(ks[1],  (Cout,), jnp.float32),
        "gn1_w":    1.0 + 0.1 * jax.random.normal(ks[2], (C,), jnp.float32),
        "gn1_b":    0.1 * jax.random.normal(ks[3],  (C,), jnp.float32),
        "conv1_w":  0.1 * jax.random.normal(ks[4],  (Cout, C, 3, 3), jnp.float32),
        "conv1_b":  0.1 * jax.random.normal(ks[5],  (Cout,), jnp.float32),
        "gn2_w":    1.0 + 0.1 * jax.random.normal(ks[6], (Cout,), jnp.float32),
        "gn2_b":    0.1 * jax.random.normal(ks[7],  (Cout,), jnp.float32),
        "conv2_w":  0.1 * jax.random.normal(ks[8],  (Cout, Cout, 3, 3), jnp.float32),
        "conv2_b":  0.1 * jax.random.normal(ks[9],  (Cout,), jnp.float32),
        "res_w":    0.1 * jax.random.normal(ks[10], (Cout, C, 1, 1), jnp.float32),
        "res_b":    0.1 * jax.random.normal(ks[11], (Cout,), jnp.float32),
    }
    x = jax.random.normal(ks[12], (B, C, H, W), jnp.float32)
    time_emb = jax.random.normal(ks[13], (B, E), jnp.float32)

    fwd = jax.jit(functools.partial(resnet_block_forward, groups=groups))
    out = jax.block_until_ready(fwd(params, x, time_emb))

    ref = ref_forward(params, x, time_emb, groups)
    assert out.shape == (B, Cout, H, W)
    # bf16 MXU operands (f32 accumulation) -> looser tolerance than pure f32.
    np.testing.assert_allclose(np.asarray(out), np.asarray(ref),
                               rtol=2e-2, atol=2e-2)

    print("KERNEL_OK")
</pallas_src>

<mosaic_0001>
module attributes {stable_mosaic.version = 11 : i64} {
  func.func @resnet_block_kernel(%arg0: i32, %arg1: memref<1x16x256xf32, #tpu.memory_space<vmem>>, %arg2: memref<16x2xf32, #tpu.memory_space<vmem>>, %arg3: memref<16x1xf32, #tpu.memory_space<vmem>>, %arg4: memref<16x1xf32, #tpu.memory_space<vmem>>, %arg5: memref<16x144xbf16, #tpu.memory_space<vmem>>, %arg6: memref<16x1xf32, #tpu.memory_space<vmem>>, %arg7: memref<1x16x1xf32, #tpu.memory_space<vmem>>, %arg8: memref<16x2xf32, #tpu.memory_space<vmem>>, %arg9: memref<16x1xf32, #tpu.memory_space<vmem>>, %arg10: memref<16x1xf32, #tpu.memory_space<vmem>>, %arg11: memref<16x160xbf16, #tpu.memory_space<vmem>>, %arg12: memref<16x1xf32, #tpu.memory_space<vmem>>, %arg13: memref<1x16x256xf32, #tpu.memory_space<vmem>>) attributes {dimension_semantics = [#tpu.dimension_semantics<parallel>], iteration_bounds = array<i64: 2>, scalar_prefetch = 0 : i64, scratch_operands = 0 : i64, tpu.core_type = #tpu.core_type<tc>, window_params = [{transform_indices = @transform_0, window_bounds = array<i64: 1, 16, 256>}, {pipeline_mode = #tpu.pipeline_mode<synchronous>, transform_indices = @transform_1, window_bounds = array<i64: 16, 2>}, {pipeline_mode = #tpu.pipeline_mode<synchronous>, transform_indices = @transform_2, window_bounds = array<i64: 16, 1>}, {pipeline_mode = #tpu.pipeline_mode<synchronous>, transform_indices = @transform_3, window_bounds = array<i64: 16, 1>}, {pipeline_mode = #tpu.pipeline_mode<synchronous>, transform_indices = @transform_4, window_bounds = array<i64: 16, 144>}, {pipeline_mode = #tpu.pipeline_mode<synchronous>, transform_indices = @transform_5, window_bounds = array<i64: 16, 1>}, {transform_indices = @transform_6, window_bounds = array<i64: 1, 16, 1>}, {pipeline_mode = #tpu.pipeline_mode<synchronous>, transform_indices = @transform_7, window_bounds = array<i64: 16, 2>}, {pipeline_mode = #tpu.pipeline_mode<synchronous>, transform_indices = @transform_8, window_bounds = array<i64: 16, 1>}, {pipeline_mode = #tpu.pipeline_mode<synchronous>, transform_indices = @transform_9, window_bounds = array<i64: 16, 1>}, {pipeline_mode = #tpu.pipeline_mode<synchronous>, transform_indices = @transform_10, window_bounds = array<i64: 16, 160>}, {pipeline_mode = #tpu.pipeline_mode<synchronous>, transform_indices = @transform_11, window_bounds = array<i64: 16, 1>}, {transform_indices = @transform_12, window_bounds = array<i64: 1, 16, 256>}]} {
    %c0 = arith.constant 0 : index
    %c0_0 = arith.constant 0 : index
    %c0_1 = arith.constant 0 : index
    %0 = vector.load %arg1[%c0, %c0_0, %c0_1] : memref<1x16x256xf32, #tpu.memory_space<vmem>>, vector<1x16x256xf32>
    %1 = vector.shape_cast %0 : vector<1x16x256xf32> to vector<16x256xf32>
    %c0_2 = arith.constant 0 : index
    %c0_3 = arith.constant 0 : index
    %2 = vector.load %arg3[%c0_2, %c0_3] : memref<16x1xf32, #tpu.memory_space<vmem>>, vector<16x1xf32>
    %c0_4 = arith.constant 0 : index
    %c0_5 = arith.constant 0 : index
    %3 = vector.load %arg4[%c0_4, %c0_5] : memref<16x1xf32, #tpu.memory_space<vmem>>, vector<16x1xf32>
    %c0_6 = arith.constant 0 : index
    %c0_7 = arith.constant 0 : index
    %4 = vector.load %arg2[%c0_6, %c0_7] : memref<16x2xf32, #tpu.memory_space<vmem>>, vector<16x2xf32>
    %cst = arith.constant dense<0.000000e+00> : vector<16xf32>
    %5 = vector.multi_reduction <add>, %1, %cst [1] : vector<16x256xf32> to vector<16xf32>
    %6 = vector.shape_cast %5 : vector<16xf32> to vector<16x1xf32>
    %7 = vector.broadcast %6 : vector<16x1xf32> to vector<16x2xf32>
    %8 = arith.mulf %7, %4 : vector<16x2xf32>
    %cst_8 = arith.constant dense<0.000000e+00> : vector<2xf32>
    %9 = vector.multi_reduction <add>, %8, %cst_8 [0] : vector<16x2xf32> to vector<2xf32>
    %10 = vector.shape_cast %9 : vector<2xf32> to vector<1x2xf32>
    %11 = vector.broadcast %10 : vector<1x2xf32> to vector<16x2xf32>
    %12 = arith.mulf %11, %4 : vector<16x2xf32>
    %cst_9 = arith.constant dense<0.000000e+00> : vector<16xf32>
    %13 = vector.multi_reduction <add>, %12, %cst_9 [1] : vector<16x2xf32> to vector<16xf32>
    %14 = vector.shape_cast %13 : vector<16xf32> to vector<16x1xf32>
    %cst_10 = arith.constant 0.001953125 : f32
    %15 = vector.broadcast %cst_10 : f32 to vector<16x1xf32>
    %16 = arith.mulf %14, %15 : vector<16x1xf32>
    %17 = vector.broadcast %16 : vector<16x1xf32> to vector<16x256xf32>
    %18 = arith.subf %1, %17 : vector<16x256xf32>
    %19 = arith.mulf %18, %18 : vector<16x256xf32>
    %cst_11 = arith.constant dense<0.000000e+00> : vector<16xf32>
    %20 = vector.multi_reduction <add>, %19, %cst_11 [1] : vector<16x256xf32> to vector<16xf32>
    %21 = vector.shape_cast %20 : vector<16xf32> to vector<16x1xf32>
    %22 = vector.broadcast %21 : vector<16x1xf32> to vector<16x2xf32>
    %23 = arith.mulf %22, %4 : vector<16x2xf32>
    %cst_12 = arith.constant dense<0.000000e+00> : vector<2xf32>
    %24 = vector.multi_reduction <add>, %23, %cst_12 [0] : vector<16x2xf32> to vector<2xf32>
    %25 = vector.shape_cast %24 : vector<2xf32> to vector<1x2xf32>
    %26 = vector.broadcast %25 : vector<1x2xf32> to vector<16x2xf32>
    %27 = arith.mulf %26, %4 : vector<16x2xf32>
    %cst_13 = arith.constant dense<0.000000e+00> : vector<16xf32>
    %28 = vector.multi_reduction <add>, %27, %cst_13 [1] : vector<16x2xf32> to vector<16xf32>
    %29 = vector.shape_cast %28 : vector<16xf32> to vector<16x1xf32>
    %cst_14 = arith.constant 0.001953125 : f32
    %30 = vector.broadcast %cst_14 : f32 to vector<16x1xf32>
    %31 = arith.mulf %29, %30 : vector<16x1xf32>
    %cst_15 = arith.constant 9.99999974E-6 : f32
    %32 = vector.broadcast %cst_15 : f32 to vector<16x1xf32>
    %33 = arith.addf %31, %32 : vector<16x1xf32>
    %34 = math.rsqrt %33 : vector<16x1xf32>
    %35 = vector.broadcast %34 : vector<16x1xf32> to vector<16x256xf32>
    %36 = arith.mulf %18, %35 : vector<16x256xf32>
    %37 = vector.broadcast %2 : vector<16x1xf32> to vector<16x256xf32>
    %38 = arith.mulf %36, %37 : vector<16x256xf32>
    %39 = vector.broadcast %3 : vector<16x1xf32> to vector<16x256xf32>
    %40 = arith.addf %38, %39 : vector<16x256xf32>
    %41 = arith.negf %40 : vector<16x256xf32>
    %42 = math.exp %41 : vector<16x256xf32>
    %cst_16 = arith.constant 1.000000e+00 : f32
    %43 = vector.broadcast %cst_16 : f32 to vector<16x256xf32>
    %44 = arith.addf %43, %42 : vector<16x256xf32>
    %45 = arith.divf %43, %44 : vector<16x256xf32>
    %46 = arith.mulf %40, %45 : vector<16x256xf32>
    %47 = tpu.iota {dimensions = array<i32: 1>} : vector<1x256xi32>
    %c16_i32 = arith.constant 16 : i32
    %c0_i32 = arith.constant 0 : i32
    %48 = arith.cmpi eq, %c16_i32, %c0_i32 : i32
    %c1_i32 = arith.constant 1 : i32
    %49 = arith.select %48, %c1_i32, %c16_i32 : i32
    %50 = vector.broadcast %49 : i32 to vector<1x256xi32>
    %51 = arith.remsi %47, %50 : vector<1x256xi32>
    %c0_i32_17 = arith.constant 0 : i32
    %52 = vector.broadcast %c0_i32_17 : i32 to vector<1x256xi32>
    %53 = arith.cmpi ne, %51, %52 : vector<1x256xi32>
    %c0_i32_18 = arith.constant 0 : i32
    %54 = vector.broadcast %c0_i32_18 : i32 to vector<1x256xi32>
    %55 = arith.cmpi slt, %51, %54 : vector<1x256xi32>
    %c0_i32_19 = arith.constant 0 : i32
    %56 = arith.cmpi slt, %49, %c0_i32_19 : i32
    %57 = vector.broadcast %56 : i1 to vector<1x256xi1>
    %58 = vector.broadcast %57 : vector<1x256xi1> to vector<1x256xi1>
    %59 = arith.xori %55, %58 : vector<1x256xi1>
    %60 = arith.andi %59, %53 : vector<1x256xi1>
    %61 = vector.broadcast %49 : i32 to vector<1x256xi32>
    %62 = arith.addi %51, %61 : vector<1x256xi32>
    %63 = arith.select %60, %62, %51 : vector<1x256xi1>, vector<1x256xi32>
    %cst_20 = arith.constant 0.000000e+00 : f32
    %64 = vector.broadcast %cst_20 : f32 to vector<16x17xf32>
    %c14_i32 = arith.constant 14 : i32
    %65 = vector.broadcast %c14_i32 : i32 to vector<1x256xi32>
    %66 = arith.cmpi sle, %63, %65 : vector<1x256xi32>
    %c1_i32_21 = arith.constant 1 : i32
    %67 = vector.broadcast %c1_i32_21 : i32 to vector<1x256xi32>
    %68 = arith.cmpi sge, %63, %67 : vector<1x256xi32>
    %cst_22 = arith.constant 0.000000e+00 : f32
    %69 = vector.shape_cast %66 : vector<1x256xi1> to vector<1x256xi1>
    %70 = vector.broadcast %69 : vector<1x256xi1> to vector<16x256xi1>
    %71 = vector.broadcast %cst_22 : f32 to vector<16x256xf32>
    %72 = arith.select %70, %46, %71 : vector<16x256xi1>, vector<16x256xf32>
    %73 = tpu.concatenate %64, %72, %64 in 1 : vector<16x17xf32>, vector<16x256xf32>, vector<16x17xf32> -> vector<16x290xf32>
    %74 = arith.truncf %73 : vector<16x290xf32> to vector<16x290xbf16>
    %75 = tpu.concatenate %64, %46, %64 in 1 : vector<16x17xf32>, vector<16x256xf32>, vector<16x17xf32> -> vector<16x290xf32>
    %76 = arith.truncf %75 : vector<16x290xf32> to vector<16x290xbf16>
    %cst_23 = arith.constant 0.000000e+00 : f32
    %77 = vector.shape_cast %68 : vector<1x256xi1> to vector<1x256xi1>
    %78 = vector.broadcast %77 : vector<1x256xi1> to vector<16x256xi1>
    %79 = vector.broadcast %cst_23 : f32 to vector<16x256xf32>
    %80 = arith.select %78, %46, %79 : vector<16x256xi1>, vector<16x256xf32>
    %81 = tpu.concatenate %64, %80, %64 in 1 : vector<16x17xf32>, vector<16x256xf32>, vector<16x17xf32> -> vector<16x290xf32>
    %82 = arith.truncf %81 : vector<16x290xf32> to vector<16x290xbf16>
    %83 = vector.extract_strided_slice %74 {offsets = [0, 0], sizes = [16, 256], strides = [1, 1]} : vector<16x290xbf16> to vector<16x256xbf16>
    %84 = vector.extract_strided_slice %76 {offsets = [0, 1], sizes = [16, 256], strides = [1, 1]} : vector<16x290xbf16> to vector<16x256xbf16>
    %85 = vector.extract_strided_slice %82 {offsets = [0, 2], sizes = [16, 256], strides = [1, 1]} : vector<16x290xbf16> to vector<16x256xbf16>
    %86 = vector.extract_strided_slice %74 {offsets = [0, 16], sizes = [16, 256], strides = [1, 1]} : vector<16x290xbf16> to vector<16x256xbf16>
    %87 = vector.extract_strided_slice %76 {offsets = [0, 17], sizes = [16, 256], strides = [1, 1]} : vector<16x290xbf16> to vector<16x256xbf16>
    %88 = vector.extract_strided_slice %82 {offsets = [0, 18], sizes = [16, 256], strides = [1, 1]} : vector<16x290xbf16> to vector<16x256xbf16>
    %89 = vector.extract_strided_slice %74 {offsets = [0, 32], sizes = [16, 256], strides = [1, 1]} : vector<16x290xbf16> to vector<16x256xbf16>
    %90 = vector.extract_strided_slice %76 {offsets = [0, 33], sizes = [16, 256], strides = [1, 1]} : vector<16x290xbf16> to vector<16x256xbf16>
    %91 = vector.extract_strided_slice %82 {offsets = [0, 34], sizes = [16, 256], strides = [1, 1]} : vector<16x290xbf16> to vector<16x256xbf16>
    %92 = tpu.concatenate %83, %84, %85, %86, %87, %88, %89, %90, %91 in 0 : vector<16x256xbf16>, vector<16x256xbf16>, vector<16x256xbf16>, vector<16x256xbf16>, vector<16x256xbf16>, vector<16x256xbf16>, vector<16x256xbf16>, vector<16x256xbf16>, vector<16x256xbf16> -> vector<144x256xbf16>
    %c0_24 = arith.constant 0 : index
    %c0_25 = arith.constant 0 : index
    %93 = vector.load %arg5[%c0_24, %c0_25] : memref<16x144xbf16, #tpu.memory_space<vmem>>, vector<16x144xbf16>
    %cst_26 = arith.constant dense<0.000000e+00> : vector<16x256xf32>
    %94 = tpu.matmul %93, %92, %cst_26 {dimension_numbers = #tpu.dot_dimension_numbers<[1], [0], [0], [1], [0, 0, 1, 1], [], []>} : vector<16x144xbf16>, vector<144x256xbf16>, vector<16x256xf32> -> vector<16x256xf32>
    %c0_27 = arith.constant 0 : index
    %c0_28 = arith.constant 0 : index
    %95 = vector.load %arg6[%c0_27, %c0_28] : memref<16x1xf32, #tpu.memory_space<vmem>>, vector<16x1xf32>
    %96 = vector.broadcast %95 : vector<16x1xf32> to vector<16x256xf32>
    %97 = arith.addf %94, %96 : vector<16x256xf32>
    %c0_29 = arith.constant 0 : index
    %c0_30 = arith.constant 0 : index
    %c0_31 = arith.constant 0 : index
    %98 = vector.load %arg7[%c0_29, %c0_30, %c0_31] : memref<1x16x1xf32, #tpu.memory_space<vmem>>, vector<1x16x1xf32>
    %99 = vector.shape_cast %98 : vector<1x16x1xf32> to vector<16x1xf32>
    %100 = vector.broadcast %99 : vector<16x1xf32> to vector<16x256xf32>
    %101 = arith.addf %97, %100 : vector<16x256xf32>
    %c0_32 = arith.constant 0 : index
    %c0_33 = arith.constant 0 : index
    %102 = vector.load %arg9[%c0_32, %c0_33] : memref<16x1xf32, #tpu.memory_space<vmem>>, vector<16x1xf32>
    %c0_34 = arith.constant 0 : index
    %c0_35 = arith.constant 0 : index
    %103 = vector.load %arg10[%c0_34, %c0_35] : memref<16x1xf32, #tpu.memory_space<vmem>>, vector<16x1xf32>
    %c0_36 = arith.constant 0 : index
    %c0_37 = arith.constant 0 : index
    %104 = vector.load %arg8[%c0_36, %c0_37] : memref<16x2xf32, #tpu.memory_space<vmem>>, vector<16x2xf32>
    %cst_38 = arith.constant dense<0.000000e+00> : vector<16xf32>
    %105 = vector.multi_reduction <add>, %101, %cst_38 [1] : vector<16x256xf32> to vector<16xf32>
    %106 = vector.shape_cast %105 : vector<16xf32> to vector<16x1xf32>
    %107 = vector.broadcast %106 : vector<16x1xf32> to vector<16x2xf32>
    %108 = arith.mulf %107, %104 : vector<16x2xf32>
    %cst_39 = arith.constant dense<0.000000e+00> : vector<2xf32>
    %109 = vector.multi_reduction <add>, %108, %cst_39 [0] : vector<16x2xf32> to vector<2xf32>
    %110 = vector.shape_cast %109 : vector<2xf32> to vector<1x2xf32>
    %111 = vector.broadcast %110 : vector<1x2xf32> to vector<16x2xf32>
    %112 = arith.mulf %111, %104 : vector<16x2xf32>
    %cst_40 = arith.constant dense<0.000000e+00> : vector<16xf32>
    %113 = vector.multi_reduction <add>, %112, %cst_40 [1] : vector<16x2xf32> to vector<16xf32>
    %114 = vector.shape_cast %113 : vector<16xf32> to vector<16x1xf32>
    %cst_41 = arith.constant 9.765625E-4 : f32
    %115 = vector.broadcast %cst_41 : f32 to vector<16x1xf32>
    %116 = arith.mulf %114, %115 : vector<16x1xf32>
    %117 = vector.broadcast %116 : vector<16x1xf32> to vector<16x256xf32>
    %118 = arith.subf %101, %117 : vector<16x256xf32>
    %119 = arith.mulf %118, %118 : vector<16x256xf32>
    %cst_42 = arith.constant dense<0.000000e+00> : vector<16xf32>
    %120 = vector.multi_reduction <add>, %119, %cst_42 [1] : vector<16x256xf32> to vector<16xf32>
    %121 = vector.shape_cast %120 : vector<16xf32> to vector<16x1xf32>
    %122 = vector.broadcast %121 : vector<16x1xf32> to vector<16x2xf32>
    %123 = arith.mulf %122, %104 : vector<16x2xf32>
    %cst_43 = arith.constant dense<0.000000e+00> : vector<2xf32>
    %124 = vector.multi_reduction <add>, %123, %cst_43 [0] : vector<16x2xf32> to vector<2xf32>
    %125 = vector.shape_cast %124 : vector<2xf32> to vector<1x2xf32>
    %126 = vector.broadcast %125 : vector<1x2xf32> to vector<16x2xf32>
    %127 = arith.mulf %126, %104 : vector<16x2xf32>
    %cst_44 = arith.constant dense<0.000000e+00> : vector<16xf32>
    %128 = vector.multi_reduction <add>, %127, %cst_44 [1] : vector<16x2xf32> to vector<16xf32>
    %129 = vector.shape_cast %128 : vector<16xf32> to vector<16x1xf32>
    %cst_45 = arith.constant 9.765625E-4 : f32
    %130 = vector.broadcast %cst_45 : f32 to vector<16x1xf32>
    %131 = arith.mulf %129, %130 : vector<16x1xf32>
    %cst_46 = arith.constant 9.99999974E-6 : f32
    %132 = vector.broadcast %cst_46 : f32 to vector<16x1xf32>
    %133 = arith.addf %131, %132 : vector<16x1xf32>
    %134 = math.rsqrt %133 : vector<16x1xf32>
    %135 = vector.broadcast %134 : vector<16x1xf32> to vector<16x256xf32>
    %136 = arith.mulf %118, %135 : vector<16x256xf32>
    %137 = vector.broadcast %102 : vector<16x1xf32> to vector<16x256xf32>
    %138 = arith.mulf %136, %137 : vector<16x256xf32>
    %139 = vector.broadcast %103 : vector<16x1xf32> to vector<16x256xf32>
    %140 = arith.addf %138, %139 : vector<16x256xf32>
    %141 = arith.negf %140 : vector<16x256xf32>
    %142 = math.exp %141 : vector<16x256xf32>
    %cst_47 = arith.constant 1.000000e+00 : f32
    %143 = vector.broadcast %cst_47 : f32 to vector<16x256xf32>
    %144 = arith.addf %143, %142 : vector<16x256xf32>
    %145 = arith.divf %143, %144 : vector<16x256xf32>
    %146 = arith.mulf %140, %145 : vector<16x256xf32>
    %147 = tpu.iota {dimensions = array<i32: 1>} : vector<1x256xi32>
    %c16_i32_48 = arith.constant 16 : i32
    %c0_i32_49 = arith.constant 0 : i32
    %148 = arith.cmpi eq, %c16_i32_48, %c0_i32_49 : i32
    %c1_i32_50 = arith.constant 1 : i32
    %149 = arith.select %148, %c1_i32_50, %c16_i32_48 : i32
    %150 = vector.broadcast %149 : i32 to vector<1x256xi32>
    %151 = arith.remsi %147, %150 : vector<1x256xi32>
    %c0_i32_51 = arith.constant 0 : i32
    %152 = vector.broadcast %c0_i32_51 : i32 to vector<1x256xi32>
    %153 = arith.cmpi ne, %151, %152 : vector<1x256xi32>
    %c0_i32_52 = arith.constant 0 : i32
    %154 = vector.broadcast %c0_i32_52 : i32 to vector<1x256xi32>
    %155 = arith.cmpi slt, %151, %154 : vector<1x256xi32>
    %c0_i32_53 = arith.constant 0 : i32
    %156 = arith.cmpi slt, %149, %c0_i32_53 : i32
    %157 = vector.broadcast %156 : i1 to vector<1x256xi1>
    %158 = vector.broadcast %157 : vector<1x256xi1> to vector<1x256xi1>
    %159 = arith.xori %155, %158 : vector<1x256xi1>
    %160 = arith.andi %159, %153 : vector<1x256xi1>
    %161 = vector.broadcast %149 : i32 to vector<1x256xi32>
    %162 = arith.addi %151, %161 : vector<1x256xi32>
    %163 = arith.select %160, %162, %151 : vector<1x256xi1>, vector<1x256xi32>
    %cst_54 = arith.constant 0.000000e+00 : f32
    %164 = vector.broadcast %cst_54 : f32 to vector<16x17xf32>
    %c14_i32_55 = arith.constant 14 : i32
    %165 = vector.broadcast %c14_i32_55 : i32 to vector<1x256xi32>
    %166 = arith.cmpi sle, %163, %165 : vector<1x256xi32>
    %c1_i32_56 = arith.constant 1 : i32
    %167 = vector.broadcast %c1_i32_56 : i32 to vector<1x256xi32>
    %168 = arith.cmpi sge, %163, %167 : vector<1x256xi32>
    %cst_57 = arith.constant 0.000000e+00 : f32
    %169 = vector.shape_cast %166 : vector<1x256xi1> to vector<1x256xi1>
    %170 = vector.broadcast %169 : vector<1x256xi1> to vector<16x256xi1>
    %171 = vector.broadcast %cst_57 : f32 to vector<16x256xf32>
    %172 = arith.select %170, %146, %171 : vector<16x256xi1>, vector<16x256xf32>
    %173 = tpu.concatenate %164, %172, %164 in 1 : vector<16x17xf32>, vector<16x256xf32>, vector<16x17xf32> -> vector<16x290xf32>
    %174 = arith.truncf %173 : vector<16x290xf32> to vector<16x290xbf16>
    %175 = tpu.concatenate %164, %146, %164 in 1 : vector<16x17xf32>, vector<16x256xf32>, vector<16x17xf32> -> vector<16x290xf32>
    %176 = arith.truncf %175 : vector<16x290xf32> to vector<16x290xbf16>
    %cst_58 = arith.constant 0.000000e+00 : f32
    %177 = vector.shape_cast %168 : vector<1x256xi1> to vector<1x256xi1>
    %178 = vector.broadcast %177 : vector<1x256xi1> to vector<16x256xi1>
    %179 = vector.broadcast %cst_58 : f32 to vector<16x256xf32>
    %180 = arith.select %178, %146, %179 : vector<16x256xi1>, vector<16x256xf32>
    %181 = tpu.concatenate %164, %180, %164 in 1 : vector<16x17xf32>, vector<16x256xf32>, vector<16x17xf32> -> vector<16x290xf32>
    %182 = arith.truncf %181 : vector<16x290xf32> to vector<16x290xbf16>
    %183 = vector.extract_strided_slice %174 {offsets = [0, 0], sizes = [16, 256], strides = [1, 1]} : vector<16x290xbf16> to vector<16x256xbf16>
    %184 = vector.extract_strided_slice %176 {offsets = [0, 1], sizes = [16, 256], strides = [1, 1]} : vector<16x290xbf16> to vector<16x256xbf16>
    %185 = vector.extract_strided_slice %182 {offsets = [0, 2], sizes = [16, 256], strides = [1, 1]} : vector<16x290xbf16> to vector<16x256xbf16>
    %186 = vector.extract_strided_slice %174 {offsets = [0, 16], sizes = [16, 256], strides = [1, 1]} : vector<16x290xbf16> to vector<16x256xbf16>
    %187 = vector.extract_strided_slice %176 {offsets = [0, 17], sizes = [16, 256], strides = [1, 1]} : vector<16x290xbf16> to vector<16x256xbf16>
    %188 = vector.extract_strided_slice %182 {offsets = [0, 18], sizes = [16, 256], strides = [1, 1]} : vector<16x290xbf16> to vector<16x256xbf16>
    %189 = vector.extract_strided_slice %174 {offsets = [0, 32], sizes = [16, 256], strides = [1, 1]} : vector<16x290xbf16> to vector<16x256xbf16>
    %190 = vector.extract_strided_slice %176 {offsets = [0, 33], sizes = [16, 256], strides = [1, 1]} : vector<16x290xbf16> to vector<16x256xbf16>
    %191 = vector.extract_strided_slice %182 {offsets = [0, 34], sizes = [16, 256], strides = [1, 1]} : vector<16x290xbf16> to vector<16x256xbf16>
    %192 = arith.truncf %1 : vector<16x256xf32> to vector<16x256xbf16>
    %193 = tpu.concatenate %183, %184, %185, %186, %187, %188, %189, %190, %191, %192 in 0 : vector<16x256xbf16>, vector<16x256xbf16>, vector<16x256xbf16>, vector<16x256xbf16>, vector<16x256xbf16>, vector<16x256xbf16>, vector<16x256xbf16>, vector<16x256xbf16>, vector<16x256xbf16>, vector<16x256xbf16> -> vector<160x256xbf16>
    %c0_59 = arith.constant 0 : index
    %c0_60 = arith.constant 0 : index
    %194 = vector.load %arg11[%c0_59, %c0_60] : memref<16x160xbf16, #tpu.memory_space<vmem>>, vector<16x160xbf16>
    %cst_61 = arith.constant dense<0.000000e+00> : vector<16x256xf32>
    %195 = tpu.matmul %194, %193, %cst_61 {dimension_numbers = #tpu.dot_dimension_numbers<[1], [0], [0], [1], [0, 0, 1, 1], [], []>} : vector<16x160xbf16>, vector<160x256xbf16>, vector<16x256xf32> -> vector<16x256xf32>
    %c0_62 = arith.constant 0 : index
    %c0_63 = arith.constant 0 : index
    %196 = vector.load %arg12[%c0_62, %c0_63] : memref<16x1xf32, #tpu.memory_space<vmem>>, vector<16x1xf32>
    %197 = vector.broadcast %196 : vector<16x1xf32> to vector<16x256xf32>
    %198 = arith.addf %195, %197 : vector<16x256xf32>
    %c0_64 = arith.constant 0 : index
    %c0_65 = arith.constant 0 : index
    %c0_66 = arith.constant 0 : index
    %199 = vector.load %arg13[%c0_64, %c0_65, %c0_66] : memref<1x16x256xf32, #tpu.memory_space<vmem>>, vector<1x16x256xf32>
    %200 = vector.shape_cast %199 : vector<1x16x256xf32> to vector<16x256xf32>
    %201 = vector.shape_cast %198 : vector<16x256xf32> to vector<1x16x256xf32>
    tpu.vector_store %arg13[%c0_64, %c0_65, %c0_66], %201 {strides = array<i32>} : memref<1x16x256xf32, #tpu.memory_space<vmem>>, vector<1x16x256xf32>,
    return
  }
  func.func @transform_0(%arg0: i32) -> (i32, i32, i32) {
    %c0_i32 = arith.constant 0 : i32
    %c0_i32_0 = arith.constant 0 : i32
    %c0_i32_1 = arith.constant 0 : i32
    return %arg0, %c0_i32, %c0_i32_0 : i32, i32, i32
  }
  func.func @transform_1(%arg0: i32) -> (i32, i32) {
    %c0_i32 = arith.constant 0 : i32
    %c0_i32_0 = arith.constant 0 : i32
    %c0_i32_1 = arith.constant 0 : i32
    return %c0_i32, %c0_i32_0 : i32, i32
  }
  func.func @transform_2(%arg0: i32) -> (i32, i32) {
    %c0_i32 = arith.constant 0 : i32
    %c0_i32_0 = arith.constant 0 : i32
    %c0_i32_1 = arith.constant 0 : i32
    return %c0_i32, %c0_i32_0 : i32, i32
  }
  func.func @transform_3(%arg0: i32) -> (i32, i32) {
    %c0_i32 = arith.constant 0 : i32
    %c0_i32_0 = arith.constant 0 : i32
    %c0_i32_1 = arith.constant 0 : i32
    return %c0_i32, %c0_i32_0 : i32, i32
  }
  func.func @transform_4(%arg0: i32) -> (i32, i32) {
    %c0_i32 = arith.constant 0 : i32
    %c0_i32_0 = arith.constant 0 : i32
    %c0_i32_1 = arith.constant 0 : i32
    return %c0_i32, %c0_i32_0 : i32, i32
  }
  func.func @transform_5(%arg0: i32) -> (i32, i32) {
    %c0_i32 = arith.constant 0 : i32
    %c0_i32_0 = arith.constant 0 : i32
    %c0_i32_1 = arith.constant 0 : i32
    return %c0_i32, %c0_i32_0 : i32, i32
  }
  func.func @transform_6(%arg0: i32) -> (i32, i32, i32) {
    %c0_i32 = arith.constant 0 : i32
    %c0_i32_0 = arith.constant 0 : i32
    %c0_i32_1 = arith.constant 0 : i32
    return %arg0, %c0_i32, %c0_i32_0 : i32, i32, i32
  }
  func.func @transform_7(%arg0: i32) -> (i32, i32) {
    %c0_i32 = arith.constant 0 : i32
    %c0_i32_0 = arith.constant 0 : i32
    %c0_i32_1 = arith.constant 0 : i32
    return %c0_i32, %c0_i32_0 : i32, i32
  }
  func.func @transform_8(%arg0: i32) -> (i32, i32) {
    %c0_i32 = arith.constant 0 : i32
    %c0_i32_0 = arith.constant 0 : i32
    %c0_i32_1 = arith.constant 0 : i32
    return %c0_i32, %c0_i32_0 : i32, i32
  }
  func.func @transform_9(%arg0: i32) -> (i32, i32) {
    %c0_i32 = arith.constant 0 : i32
    %c0_i32_0 = arith.constant 0 : i32
    %c0_i32_1 = arith.constant 0 : i32
    return %c0_i32, %c0_i32_0 : i32, i32
  }
  func.func @transform_10(%arg0: i32) -> (i32, i32) {
    %c0_i32 = arith.constant 0 : i32
    %c0_i32_0 = arith.constant 0 : i32
    %c0_i32_1 = arith.constant 0 : i32
    return %c0_i32, %c0_i32_0 : i32, i32
  }
  func.func @transform_11(%arg0: i32) -> (i32, i32) {
    %c0_i32 = arith.constant 0 : i32
    %c0_i32_0 = arith.constant 0 : i32
    %c0_i32_1 = arith.constant 0 : i32
    return %c0_i32, %c0_i32_0 : i32, i32
  }
  func.func @transform_12(%arg0: i32) -> (i32, i32, i32) {
    %c0_i32 = arith.constant 0 : i32
    %c0_i32_0 = arith.constant 0 : i32
    %c0_i32_1 = arith.constant 0 : i32
    return %arg0, %c0_i32, %c0_i32_0 : i32, i32, i32
  }
}

</mosaic_0001>

<llo_original>
// kernel: resnet_block_forward.1
$region0: #{resnet_block_forward.1}
  #allocation0 [shape = 'u32[]', space=smem, size = 0x4, offset = 0x4, fixed_abs, tag = 'smem constant byte address 0x4 - core index']
  #allocation1 [shape = 'u32[144,128]{1,0:T(1,128)}', space=vmem, size = 0x12000, scoped, tag = 'internal scratch']
  %s0 = inlined_call_operand.vmem [shape: f32[2,16,256], index: 0, kind: input, shape index: {}]
  %s1 = inlined_call_operand.vmem [shape: f32[16,2], index: 1, kind: input, shape index: {}]
  %s2 = inlined_call_operand.vmem [shape: f32[16,1], index: 2, kind: input, shape index: {}]
  %s3 = inlined_call_operand.vmem [shape: f32[16,1], index: 3, kind: input, shape index: {}]
  %s4 = inlined_call_operand.vmem [shape: bf16[16,144], index: 4, kind: input, shape index: {}]
  %s5 = inlined_call_operand.vmem [shape: f32[16,1], index: 5, kind: input, shape index: {}]
  %s6 = inlined_call_operand.vmem [shape: f32[2,16,1], index: 6, kind: input, shape index: {}]
  %s7 = inlined_call_operand.vmem [shape: f32[16,2], index: 7, kind: input, shape index: {}]
  %s8 = inlined_call_operand.vmem [shape: f32[16,1], index: 8, kind: input, shape index: {}]
  %s9 = inlined_call_operand.vmem [shape: f32[16,1], index: 9, kind: input, shape index: {}]
  %s10 = inlined_call_operand.vmem [shape: bf16[16,160], index: 10, kind: input, shape index: {}]
  %s11 = inlined_call_operand.vmem [shape: f32[16,1], index: 11, kind: input, shape index: {}]
  %s12 = inlined_call_operand.vmem [shape: f32[2,16,256], index: 12, kind: output, shape index: {}]
  %s13 = sld [smem:[#allocation0]]
  $region81: #{resnet_block_forward.1} parent=0
    _
  %s15 = ssub.s32 1, %s13
  %s16 = scalar_select 0, %s15, %s13
  loop: start=0, step=1, limit=4
  $region2: #{resnet_block_forward.1} parent=0 // loop_pre_header
    _
  $region3: #{resnet_block_forward.1} parent=0 // loop_header
    %s18 = sphi 0, %s22
    %p19 = scmp.ge.s32.totalorder %s18, 4
    %s28 = sphi 0, %s30
    %s31 = sphi 0, %s28
    %s32 = sphi 0, %s31
    %s48 = sphi 0, %s32
    %s52 = sphi 0, %s52
    %s54 = sphi 0, %s52
    %s55 = sphi 0, %s54
    %s69 = sphi 0, %s55
    %s73 = sphi 0, %s73
    %s75 = sphi 0, %s73
    %s76 = sphi 0, %s75
    %s90 = sphi 0, %s76
    %s94 = sphi 0, %s94
    %s96 = sphi 0, %s94
    %s97 = sphi 0, %s96
    %s111 = sphi 0, %s97
    %s115 = sphi 0, %s115
    %s117 = sphi 0, %s115
    %s118 = sphi 0, %s117
    %s132 = sphi 0, %s118
    %s136 = sphi 0, %s136
    %s138 = sphi 0, %s136
    %s139 = sphi 0, %s138
    %s153 = sphi 0, %s139
    %s159 = sphi 0, %s161
    %s162 = sphi 0, %s159
    %s163 = sphi 0, %s162
    %s179 = sphi 0, %s163
    %s183 = sphi 0, %s183
    %s185 = sphi 0, %s183
    %s186 = sphi 0, %s185
    %s200 = sphi 0, %s186
    %s204 = sphi 0, %s204
    %s206 = sphi 0, %s204
    %s207 = sphi 0, %s206
    %s221 = sphi 0, %s207
    %s225 = sphi 0, %s225
    %s227 = sphi 0, %s225
    %s228 = sphi 0, %s227
    %s242 = sphi 0, %s228
    %s246 = sphi 0, %s246
    %s248 = sphi 0, %s246
    %s249 = sphi 0, %s248
    %s263 = sphi 0, %s249
    %s267 = sphi 0, %s267
    %s269 = sphi 0, %s267
    %s270 = sphi 0, %s269
    %s284 = sphi 0, %s270
    %s290 = sphi 0, %s292
    %s293 = sphi 0, %s290
    %s294 = sphi 0, %s293
    %s310 = sphi 0, %s294
  $region4: #{resnet_block_forward.1} parent=0 // loop_header_branch
    %21 = sbr.rel (%p19) target = $region8
  $region5: #{resnet_block_forward.1} parent=0 // loop_body
    %s23 = ssub.s32 %s18, 1
    %s24 = ssub.s32 %s18, 2
    %s25 = sadd.s32 %s18, 1
    %s26 = ssub.s32 %s18, %s25
    %p27 = scmp.eq.s32.totalorder %s26, 0
    %s29 = sadd.s32 %s28, 1
    %s30 = scalar_select %p27, %s28, %s29
    %p33 = pneg %p27
    %p34 = scmp.eq.s32.totalorder %s18, 1
    %p35 = por %p33, %p34
    %p36 = scmp.ne.s32.totalorder %s28, %s31
    %p37 = scmp.eq.s32.totalorder %s18, 0
    %p38 = por %p36, %p37
    %p39 = scmp.ne.s32.totalorder %s28, %s31
    %p40 = scmp.eq.s32.totalorder %s23, 1
    %p41 = por %p39, %p40
    %p42 = scmp.ne.s32.totalorder %s31, %s32
    %p43 = scmp.eq.s32.totalorder %s23, 0
    %p44 = por %p42, %p43
    %p45 = scmp.ne.s32.totalorder %s31, %s32
    %p46 = scmp.eq.s32.totalorder %s24, 1
    %p47 = por %p45, %p46
    %p49 = scmp.ne.s32.totalorder %s32, %s48
    %p50 = scmp.eq.s32.totalorder %s24, 0
    %p51 = por %p49, %p50
    %s53 = sadd.s32 %s52, 1
    %p56 = scmp.eq.s32.totalorder %s18, 1
    %p57 = scmp.ne.s32.totalorder %s52, %s54
    %p58 = scmp.eq.s32.totalorder %s18, 0
    %p59 = por %p57, %p58
    %p60 = scmp.ne.s32.totalorder %s52, %s54
    %p61 = scmp.eq.s32.totalorder %s23, 1
    %p62 = por %p60, %p61
    %p63 = scmp.ne.s32.totalorder %s54, %s55
    %p64 = scmp.eq.s32.totalorder %s23, 0
    %p65 = por %p63, %p64
    %p66 = scmp.ne.s32.totalorder %s54, %s55
    %p67 = scmp.eq.s32.totalorder %s24, 1
    %p68 = por %p66, %p67
    %p70 = scmp.ne.s32.totalorder %s55, %s69
    %p71 = scmp.eq.s32.totalorder %s24, 0
    %p72 = por %p70, %p71
    %s74 = sadd.s32 %s73, 1
    %p77 = scmp.eq.s32.totalorder %s18, 1
    %p78 = scmp.ne.s32.totalorder %s73, %s75
    %p79 = scmp.eq.s32.totalorder %s18, 0
    %p80 = por %p78, %p79
    %p81 = scmp.ne.s32.totalorder %s73, %s75
    %p82 = scmp.eq.s32.totalorder %s23, 1
    %p83 = por %p81, %p82
    %p84 = scmp.ne.s32.totalorder %s75, %s76
    %p85 = scmp.eq.s32.totalorder %s23, 0
    %p86 = por %p84, %p85
    %p87 = scmp.ne.s32.totalorder %s75, %s76
    %p88 = scmp.eq.s32.totalorder %s24, 1
    %p89 = por %p87, %p88
    %p91 = scmp.ne.s32.totalorder %s76, %s90
    %p92 = scmp.eq.s32.totalorder %s24, 0
    %p93 = por %p91, %p92
    %s95 = sadd.s32 %s94, 1
    %p98 = scmp.eq.s32.totalorder %s18, 1
    %p99 = scmp.ne.s32.totalorder %s94, %s96
    %p100 = scmp.eq.s32.totalorder %s18, 0
    %p101 = por %p99, %p100
    %p102 = scmp.ne.s32.totalorder %s94, %s96
    %p103 = scmp.eq.s32.totalorder %s23, 1
    %p104 = por %p102, %p103
    %p105 = scmp.ne.s32.totalorder %s96, %s97
    %p106 = scmp.eq.s32.totalorder %s23, 0
    %p107 = por %p105, %p106
    %p108 = scmp.ne.s32.totalorder %s96, %s97
    %p109 = scmp.eq.s32.totalorder %s24, 1
    %p110 = por %p108, %p109
    %p112 = scmp.ne.s32.totalorder %s97, %s111
    %p113 = scmp.eq.s32.totalorder %s24, 0
    %p114 = por %p112, %p113
    %s116 = sadd.s32 %s115, 1
    %p119 = scmp.eq.s32.totalorder %s18, 1
    %p120 = scmp.ne.s32.totalorder %s115, %s117
    %p121 = scmp.eq.s32.totalorder %s18, 0
    %p122 = por %p120, %p121
    %p123 = scmp.ne.s32.totalorder %s115, %s117
    %p124 = scmp.eq.s32.totalorder %s23, 1
    %p125 = por %p123, %p124
    %p126 = scmp.ne.s32.totalorder %s117, %s118
    %p127 = scmp.eq.s32.totalorder %s23, 0
    %p128 = por %p126, %p127
    %p129 = scmp.ne.s32.totalorder %s117, %s118
    %p130 = scmp.eq.s32.totalorder %s24, 1
    %p131 = por %p129, %p130
    %p133 = scmp.ne.s32.totalorder %s118, %s132
    %p134 = scmp.eq.s32.totalorder %s24, 0
    %p135 = por %p133, %p134
    %s137 = sadd.s32 %s136, 1
    %p140 = scmp.eq.s32.totalorder %s18, 1
    %p141 = scmp.ne.s32.totalorder %s136, %s138
    %p142 = scmp.eq.s32.totalorder %s18, 0
    %p143 = por %p141, %p142
    %p144 = scmp.ne.s32.totalorder %s136, %s138
    %p145 = scmp.eq.s32.totalorder %s23, 1
    %p146 = por %p144, %p145
    %p147 = scmp.ne.s32.totalorder %s138, %s139
    %p148 = scmp.eq.s32.totalorder %s23, 0
    %p149 = por %p147, %p148
    %p150 = scmp.ne.s32.totalorder %s138, %s139
    %p151 = scmp.eq.s32.totalorder %s24, 1
    %p152 = por %p150, %p151
    %p154 = scmp.ne.s32.totalorder %s139, %s153
    %p155 = scmp.eq.s32.totalorder %s24, 0
    %p156 = por %p154, %p155
    %s157 = ssub.s32 %s18, %s25
    %p158 = scmp.eq.s32.totalorder %s157, 0
    %s160 = sadd.s32 %s159, 1
    %s161 = scalar_select %p158, %s159, %s160
    %p164 = pneg %p158
    %p165 = scmp.eq.s32.totalorder %s18, 1
    %p166 = por %p164, %p165
    %p167 = scmp.ne.s32.totalorder %s159, %s162
    %p168 = scmp.eq.s32.totalorder %s18, 0
    %p169 = por %p167, %p168
    %p170 = scmp.ne.s32.totalorder %s159, %s162
    %p171 = scmp.eq.s32.totalorder %s23, 1
    %p172 = por %p170, %p171
    %p173 = scmp.ne.s32.totalorder %s162, %s163
    %p174 = scmp.eq.s32.totalorder %s23, 0
    %p175 = por %p173, %p174
    %p176 = scmp.ne.s32.totalorder %s162, %s163
    %p177 = scmp.eq.s32.totalorder %s24, 1
    %p178 = por %p176, %p177
    %p180 = scmp.ne.s32.totalorder %s163, %s179
    %p181 = scmp.eq.s32.totalorder %s24, 0
    %p182 = por %p180, %p181
    %s184 = sadd.s32 %s183, 1
    %p187 = scmp.eq.s32.totalorder %s18, 1
    %p188 = scmp.ne.s32.totalorder %s183, %s185
    %p189 = scmp.eq.s32.totalorder %s18, 0
    %p190 = por %p188, %p189
    %p191 = scmp.ne.s32.totalorder %s183, %s185
    %p192 = scmp.eq.s32.totalorder %s23, 1
    %p193 = por %p191, %p192
    %p194 = scmp.ne.s32.totalorder %s185, %s186
    %p195 = scmp.eq.s32.totalorder %s23, 0
    %p196 = por %p194, %p195
    %p197 = scmp.ne.s32.totalorder %s185, %s186
    %p198 = scmp.eq.s32.totalorder %s24, 1
    %p199 = por %p197, %p198
    %p201 = scmp.ne.s32.totalorder %s186, %s200
    %p202 = scmp.eq.s32.totalorder %s24, 0
    %p203 = por %p201, %p202
    %s205 = sadd.s32 %s204, 1
    %p208 = scmp.eq.s32.totalorder %s18, 1
    %p209 = scmp.ne.s32.totalorder %s204, %s206
    %p210 = scmp.eq.s32.totalorder %s18, 0
    %p211 = por %p209, %p210
    %p212 = scmp.ne.s32.totalorder %s204, %s206
    %p213 = scmp.eq.s32.totalorder %s23, 1
    %p214 = por %p212, %p213
    %p215 = scmp.ne.s32.totalorder %s206, %s207
    %p216 = scmp.eq.s32.totalorder %s23, 0
    %p217 = por %p215, %p216
    %p218 = scmp.ne.s32.totalorder %s206, %s207
    %p219 = scmp.eq.s32.totalorder %s24, 1
    %p220 = por %p218, %p219
    %p222 = scmp.ne.s32.totalorder %s207, %s221
    %p223 = scmp.eq.s32.totalorder %s24, 0
    %p224 = por %p222, %p223
    %s226 = sadd.s32 %s225, 1
    %p229 = scmp.eq.s32.totalorder %s18, 1
    %p230 = scmp.ne.s32.totalorder %s225, %s227
    %p231 = scmp.eq.s32.totalorder %s18, 0
    %p232 = por %p230, %p231
    %p233 = scmp.ne.s32.totalorder %s225, %s227
    %p234 = scmp.eq.s32.totalorder %s23, 1
    %p235 = por %p233, %p234
    %p236 = scmp.ne.s32.totalorder %s227, %s228
    %p237 = scmp.eq.s32.totalorder %s23, 0
    %p238 = por %p236, %p237
    %p239 = scmp.ne.s32.totalorder %s227, %s228
    %p240 = scmp.eq.s32.totalorder %s24, 1
    %p241 = por %p239, %p240
    %p243 = scmp.ne.s32.totalorder %s228, %s242
    %p244 = scmp.eq.s32.totalorder %s24, 0
    %p245 = por %p243, %p244
    %s247 = sadd.s32 %s246, 1
    %p250 = scmp.eq.s32.totalorder %s18, 1
    %p251 = scmp.ne.s32.totalorder %s246, %s248
    %p252 = scmp.eq.s32.totalorder %s18, 0
    %p253 = por %p251, %p252
    %p254 = scmp.ne.s32.totalorder %s246, %s248
    %p255 = scmp.eq.s32.totalorder %s23, 1
    %p256 = por %p254, %p255
    %p257 = scmp.ne.s32.totalorder %s248, %s249
    %p258 = scmp.eq.s32.totalorder %s23, 0
    %p259 = por %p257, %p258
    %p260 = scmp.ne.s32.totalorder %s248, %s249
    %p261 = scmp.eq.s32.totalorder %s24, 1
    %p262 = por %p260, %p261
    %p264 = scmp.ne.s32.totalorder %s249, %s263
    %p265 = scmp.eq.s32.totalorder %s24, 0
    %p266 = por %p264, %p265
    %s268 = sadd.s32 %s267, 1
    %p271 = scmp.eq.s32.totalorder %s18, 1
    %p272 = scmp.ne.s32.totalorder %s267, %s269
    %p273 = scmp.eq.s32.totalorder %s18, 0
    %p274 = por %p272, %p273
    %p275 = scmp.ne.s32.totalorder %s267, %s269
    %p276 = scmp.eq.s32.totalorder %s23, 1
    %p277 = por %p275, %p276
    %p278 = scmp.ne.s32.totalorder %s269, %s270
    %p279 = scmp.eq.s32.totalorder %s23, 0
    %p280 = por %p278, %p279
    %p281 = scmp.ne.s32.totalorder %s269, %s270
    %p282 = scmp.eq.s32.totalorder %s24, 1
    %p283 = por %p281, %p282
    %p285 = scmp.ne.s32.totalorder %s270, %s284
    %p286 = scmp.eq.s32.totalorder %s24, 0
    %p287 = por %p285, %p286
    %s288 = ssub.s32 %s18, %s25
    %p289 = scmp.eq.s32.totalorder %s288, 0
    %s291 = sadd.s32 %s290, 1
    %s292 = scalar_select %p289, %s290, %s291
    %p295 = pneg %p289
    %p296 = scmp.eq.s32.totalorder %s18, 1
    %p297 = por %p295, %p296
    %p298 = scmp.ne.s32.totalorder %s290, %s293
    %p299 = scmp.eq.s32.totalorder %s18, 0
    %p300 = por %p298, %p299
    %p301 = scmp.ne.s32.totalorder %s290, %s293
    %p302 = scmp.eq.s32.totalorder %s23, 1
    %p303 = por %p301, %p302
    %p304 = scmp.ne.s32.totalorder %s293, %s294
    %p305 = scmp.eq.s32.totalorder %s23, 0
    %p306 = por %p304, %p305
    %p307 = scmp.ne.s32.totalorder %s293, %s294
    %p308 = scmp.eq.s32.totalorder %s24, 1
    %p309 = por %p307, %p308
    %p311 = scmp.ne.s32.totalorder %s294, %s310
    %p312 = scmp.eq.s32.totalorder %s24, 0
    %p313 = por %p311, %p312
    %p314 = scmp.le.s32.totalorder 1, %s18
    %p315 = scmp.lt.s32.totalorder %s18, 3
    %p316 = pnand %p314, %p315
    %p317 = pneg %p316
    // Predicated region
    $region9: #{resnet_block_forward.1} parent=5 // pred_check
      _
    $region10: #{resnet_block_forward.1} parent=5 // pred_check_branch
      %319 = sbr.rel (%p316) target = $region12
    $region11: #{resnet_block_forward.1} parent=5 // pred_region
      %s320 = ssub.s32 %s18, 1
      // Predicated region
      $region13: #{resnet_block_forward.1} parent=11 // pred_check
        %p321 = pneg %p65
      $region14: #{resnet_block_forward.1} parent=11 // pred_check_branch
        %323 = sbr.rel (%p321) target = $region16
      $region15: #{resnet_block_forward.1} parent=11 // pred_region
        _
      $region16: #{resnet_block_forward.1} parent=11 // pred_fallthru
        _
      // Predicated region
      $region17: #{resnet_block_forward.1} parent=11 // pred_check
        %p324 = pneg %p86
      $region18: #{resnet_block_forward.1} parent=11 // pred_check_branch
        %326 = sbr.rel (%p324) target = $region20
      $region19: #{resnet_block_forward.1} parent=11 // pred_region
        _
      $region20: #{resnet_block_forward.1} parent=11 // pred_fallthru
        _
      // Predicated region
      $region21: #{resnet_block_forward.1} parent=11 // pred_check
        %p327 = pneg %p107
      $region22: #{resnet_block_forward.1} parent=11 // pred_check_branch
        %329 = sbr.rel (%p327) target = $region24
      $region23: #{resnet_block_forward.1} parent=11 // pred_region
        _
      $region24: #{resnet_block_forward.1} parent=11 // pred_fallthru
        _
      // Predicated region
      $region25: #{resnet_block_forward.1} parent=11 // pred_check
        %p330 = pneg %p128
      $region26: #{resnet_block_forward.1} parent=11 // pred_check_branch
        %332 = sbr.rel (%p330) target = $region28
      $region27: #{resnet_block_forward.1} parent=11 // pred_region
        _
      $region28: #{resnet_block_forward.1} parent=11 // pred_fallthru
        _
      // Predicated region
      $region29: #{resnet_block_forward.1} parent=11 // pred_check
        %p333 = pneg %p149
      $region30: #{resnet_block_forward.1} parent=11 // pred_check_branch
        %335 = sbr.rel (%p333) target = $region32
      $region31: #{resnet_block_forward.1} parent=11 // pred_region
        _
      $region32: #{resnet_block_forward.1} parent=11 // pred_fallthru
        _
      // Predicated region
      $region33: #{resnet_block_forward.1} parent=11 // pred_check
        %p336 = pneg %p196
      $region34: #{resnet_block_forward.1} parent=11 // pred_check_branch
        %338 = sbr.rel (%p336) target = $region36
      $region35: #{resnet_block_forward.1} parent=11 // pred_region
        _
      $region36: #{resnet_block_forward.1} parent=11 // pred_fallthru
        _
      // Predicated region
      $region37: #{resnet_block_forward.1} parent=11 // pred_check
        %p339 = pneg %p217
      $region38: #{resnet_block_forward.1} parent=11 // pred_check_branch
        %341 = sbr.rel (%p339) target = $region40
      $region39: #{resnet_block_forward.1} parent=11 // pred_region
        _
      $region40: #{resnet_block_forward.1} parent=11 // pred_fallthru
        _
      // Predicated region
      $region41: #{resnet_block_forward.1} parent=11 // pred_check
        %p342 = pneg %p238
      $region42: #{resnet_block_forward.1} parent=11 // pred_check_branch
        %344 = sbr.rel (%p342) target = $region44
      $region43: #{resnet_block_forward.1} parent=11 // pred_region
        _
      $region44: #{resnet_block_forward.1} parent=11 // pred_fallthru
        _
      // Predicated region
      $region45: #{resnet_block_forward.1} parent=11 // pred_check
        %p345 = pneg %p259
      $region46: #{resnet_block_forward.1} parent=11 // pred_check_branch
        %347 = sbr.rel (%p345) target = $region48
      $region47: #{resnet_block_forward.1} parent=11 // pred_region
        _
      $region48: #{resnet_block_forward.1} parent=11 // pred_fallthru
        _
      // Predicated region
      $region49: #{resnet_block_forward.1} parent=11 // pred_check
        %p348 = pneg %p280
      $region50: #{resnet_block_forward.1} parent=11 // pred_check_branch
        %350 = sbr.rel (%p348) target = $region52
      $region51: #{resnet_block_forward.1} parent=11 // pred_region
        _
      $region52: #{resnet_block_forward.1} parent=11 // pred_fallthru
        _
    $region12: #{resnet_block_forward.1} parent=5 // pred_fallthru
      _
    %p351 = scmp.lt.s32.totalorder %s18, 2
    // Predicated region
    $region53: #{resnet_block_forward.1} parent=5 // pred_check
      %p352 = pneg %p351
    $region54: #{resnet_block_forward.1} parent=5 // pred_check_branch
      %354 = sbr.rel (%p352) target = $region56
    $region55: #{resnet_block_forward.1} parent=5 // pred_region
      // Predicated region
      $region57: #{resnet_block_forward.1} parent=55 // pred_check
        %p355 = pneg %p38
      $region58: #{resnet_block_forward.1} parent=55 // pred_check_branch
        %357 = sbr.rel (%p355) target = $region60
      $region59: #{resnet_block_forward.1} parent=55 // pred_region
        %p358 = scmp.lt.s32.totalorder %s18, 1
        %s359 = scalar_select %p358, %s18, 1
        %s360 = smul.addr %s359, 4
        %s361 = smul.addr %s360, 8
        %s362 = scalar_lea.vmem %s0, %s361
      $region60: #{resnet_block_forward.1} parent=55 // pred_fallthru
        _
      // Predicated region
      $region61: #{resnet_block_forward.1} parent=55 // pred_check
        %p363 = pneg %p169
      $region62: #{resnet_block_forward.1} parent=55 // pred_check_branch
        %365 = sbr.rel (%p363) target = $region64
      $region63: #{resnet_block_forward.1} parent=55 // pred_region
        %p366 = scmp.lt.s32.totalorder %s18, 1
        %s367 = scalar_select %p366, %s18, 1
        %s368 = smul.addr %s367, 2
        %s369 = smul.addr %s368, 8
        %s370 = scalar_lea.vmem %s6, %s369
      $region64: #{resnet_block_forward.1} parent=55 // pred_fallthru
        _
    $region56: #{resnet_block_forward.1} parent=5 // pred_fallthru
      _
    %p371 = scmp.le.s32.totalorder 1, %s18
    %p372 = scmp.lt.s32.totalorder %s18, 3
    %p373 = pnand %p371, %p372
    %p374 = pneg %p373
    // Predicated region
    $region65: #{resnet_block_forward.1} parent=5 // pred_check
      _
    $region66: #{resnet_block_forward.1} parent=5 // pred_check_branch
      %376 = sbr.rel (%p373) target = $region68
    $region67: #{resnet_block_forward.1} parent=5 // pred_region
      %s377 = ssub.s32 %s18, 1
      %p378 = scmp.lt.s32.totalorder %s23, 1
      %s379 = scalar_select %p378, %s23, 1
      %s380 = smul.addr %s379, 4
      %s381 = smul.addr %s380, 8
      %s382 = scalar_lea.vmem %s0, %s381
      %p383 = pneg %p44
      %p384 = pneg %p41
      %p385 = pneg %p65
      %p386 = pneg %p62
      %p387 = pneg %p86
      %p388 = pneg %p83
      %p389 = pneg %p107
      %p390 = pneg %p104
      %p391 = pneg %p128
      %p392 = pneg %p125
      %p393 = pneg %p149
      %p394 = pneg %p146
      %p395 = scmp.lt.s32.totalorder %s23, 1
      %s396 = scalar_select %p395, %s23, 1
      %s397 = smul.addr %s396, 2
      %s398 = smul.addr %s397, 8
      %s399 = scalar_lea.vmem %s6, %s398
      %p400 = pneg %p175
      %p401 = pneg %p172
      %p402 = pneg %p196
      %p403 = pneg %p193
      %p404 = pneg %p217
      %p405 = pneg %p214
      %p406 = pneg %p238
      %p407 = pneg %p235
      %p408 = pneg %p259
      %p409 = pneg %p256
      %p410 = pneg %p280
      %p411 = pneg %p277
      %p412 = pneg %p306
      %p413 = pneg %p303
      %p414 = scmp.lt.s32.totalorder %s23, 1
      %s415 = scalar_select %p414, %s23, 1
      %s416 = smul.addr %s415, 4
      %s417 = smul.addr %s416, 8
      %s418 = scalar_lea.vmem %s12, %s417
      %p419 = scmp.lt.s32.totalorder %s23, 1
      %s420 = scalar_select %p419, %s23, 1
      %s421 = smul.addr %s420, 4
      %s422 = smul.addr %s421, 8
      %s423 = scalar_lea.vmem %s0, %s422
      %p424 = scmp.lt.s32.totalorder %s23, 1
      %s425 = scalar_select %p424, %s23, 1
      %s426 = smul.addr %s425, 2
      %s427 = smul.addr %s426, 8
      %s428 = scalar_lea.vmem %s6, %s427
      %p429 = scmp.lt.s32.totalorder %s23, 1
      %s430 = scalar_select %p429, %s23, 1
      %s431 = smul.addr %s430, 4
      %s432 = smul.addr %s431, 8
      %s433 = scalar_lea.vmem %s12, %s432
      %v435 = vld [vmem:[%s423] sm:$0xff]
      %v436 = vld [vmem:[%s423 + $0x8] sm:$0xff]
      %v437 = vld [vmem:[%s423 + $0x10] sm:$0xff]
      %v438 = vld [vmem:[%s423 + $0x18] sm:$0xff]
      %v439 = vld [vmem:[%s2] sm:$0xff]
      %v440 = vld [vmem:[%s2 + $0x8] sm:$0xff]
      %v441 = vld [vmem:[%s3] sm:$0xff]
      %v442 = vld [vmem:[%s3 + $0x8] sm:$0xff]
      %v443 = vld [vmem:[%s1] sm:$0xff]
      %v444 = vld [vmem:[%s1 + $0x8] sm:$0xff]
      %v445 = vadd.f32 %v435, %v436
      %446 = vadd.xlane.f32.xlu0 %v445
      %v447 = vpop.xlane.xlu0 %446
      %v448 = vadd.f32 %v437, %v438
      %449 = vadd.xlane.f32.xlu0 %v448
      %v450 = vpop.xlane.xlu0 %449
      %v451 = vmul.f32 %v447, %v443
      %v452 = vmul.f32 %v450, %v444
      %vm453 = vcmask 15360
      %v454 = vsel %vm453, %v451, 0.0
      %v455 = vsel %vm453, %v452, 0.0
      %v456 = vadd.f32 %v454, %v455
      %v457 = vrot.slane %v456, 4
      %v458 = vadd.f32 %v456, %v457
      %v459 = vrot.slane %v458, 2
      %v460 = vadd.f32 %v458, %v459
      %v461 = vrot.slane %v460, 1
      %v462 = vadd.f32 %v460, %v461
      %v463 = vmul.f32 %v462, %v443
      %v464 = vmul.f32 %v462, %v444
      %v465 = vsel %vm453, %v463, 0.0
      %466 = vadd.xlane.f32.xlu0 %v465
      %v467 = vpop.xlane.xlu0 %466
      %v468 = vsel %vm453, %v464, 0.0
      %469 = vadd.xlane.f32.xlu0 %v468
      %v470 = vpop.xlane.xlu0 %469
      %v471 = vmul.f32 %v467, 0.001953125
      %v472 = vmul.f32 %v470, 0.001953125
      %v473 = vsub.f32 %v435, %v471
      %v474 = vsub.f32 %v436, %v471
      %v475 = vsub.f32 %v437, %v472
      %v476 = vsub.f32 %v438, %v472
      %v477 = vmul.f32 %v473, %v473
      %v478 = vmul.f32 %v474, %v474
      %v479 = vmul.f32 %v475, %v475
      %v480 = vmul.f32 %v476, %v476
      %v481 = vadd.f32 %v477, %v478
      %482 = vadd.xlane.f32.xlu0 %v481
      %v483 = vpop.xlane.xlu0 %482
      %v484 = vadd.f32 %v479, %v480
      %485 = vadd.xlane.f32.xlu0 %v484
      %v486 = vpop.xlane.xlu0 %485
      %v487 = vmul.f32 %v483, %v443
      %v488 = vmul.f32 %v486, %v444
      %v489 = vsel %vm453, %v487, 0.0
      %v490 = vsel %vm453, %v488, 0.0
      %v491 = vadd.f32 %v489, %v490
      %v492 = vrot.slane %v491, 4
      %v493 = vadd.f32 %v491, %v492
      %v494 = vrot.slane %v493, 2
      %v495 = vadd.f32 %v493, %v494
      %v496 = vrot.slane %v495, 1
      %v497 = vadd.f32 %v495, %v496
      %v498 = vmul.f32 %v497, %v443
      %v499 = vmul.f32 %v497, %v444
      %v500 = vsel %vm453, %v498, 0.0
      %501 = vadd.xlane.f32.xlu0 %v500
      %v502 = vpop.xlane.xlu0 %501
      %v503 = vsel %vm453, %v499, 0.0
      %504 = vadd.xlane.f32.xlu0 %v503
      %v505 = vpop.xlane.xlu0 %504
      %v506 = vmul.f32 %v502, 0.001953125
      %v507 = vmul.f32 %v505, 0.001953125
      %v508 = vadd.f32 %v506, 1e-05
      %v509 = vadd.f32 %v507, 1e-05
      %v510 = vrsqrt.pop %v508
      %v511 = vrsqrt.pop %v509
      %v512 = vmul.f32 %v473, %v510
      %v513 = vmul.f32 %v474, %v510
      %v514 = vmul.f32 %v475, %v511
      %v515 = vmul.f32 %v476, %v511
      %517 = vset.pattern.permute.xlu0 0
      %518 = vperm.xlu0 %517, %v439
      %v519 = vpop.permute.xlu0 %518
      %522 = vset.pattern.permute.xlu0 0
      %523 = vperm.xlu0 %522, %v440
      %v524 = vpop.permute.xlu0 %523
      %v526 = vmul.f32 %v512, %v519
      %v527 = vmul.f32 %v513, %v519
      %v528 = vmul.f32 %v514, %v524
      %v529 = vmul.f32 %v515, %v524
      %531 = vset.pattern.permute.xlu0 0
      %532 = vperm.xlu0 %531, %v441
      %v533 = vpop.permute.xlu0 %532
      %536 = vset.pattern.permute.xlu0 0
      %537 = vperm.xlu0 %536, %v442
      %v538 = vpop.permute.xlu0 %537
      %v540 = vadd.f32 %v526, %v533
      %v541 = vadd.f32 %v527, %v533
      %v542 = vadd.f32 %v528, %v538
      %v543 = vadd.f32 %v529, %v538
      %v544 = vxor.u32 %v540, 2147483648
      %v545 = vxor.u32 %v541, 2147483648
      %v546 = vxor.u32 %v542, 2147483648
      %v547 = vxor.u32 %v543, 2147483648
      %v548 = vmul.f32 %v544, 1.442695
      %v549 = vpow.pop %v548
      %v550 = vmul.f32 %v545, 1.442695
      %v551 = vpow.pop %v550
      %v552 = vmul.f32 %v546, 1.442695
      %v553 = vpow.pop %v552
      %v554 = vmul.f32 %v547, 1.442695
      %v555 = vpow.pop %v554
      %v556 = vadd.f32 %v549, 1.0
      %v557 = vadd.f32 %v551, 1.0
      %v558 = vadd.f32 %v553, 1.0
      %v559 = vadd.f32 %v555, 1.0
      %v560 = vrcp.pop %v556
      %v561 = vmul.f32 1.0, %v560
      %v562 = vrcp.pop %v557
      %v563 = vmul.f32 1.0, %v562
      %v564 = vrcp.pop %v558
      %v565 = vmul.f32 1.0, %v564
      %v566 = vrcp.pop %v559
      %v567 = vmul.f32 1.0, %v566
      %v568 = vmul.f32 %v540, %v561
      %v569 = vmul.f32 %v541, %v563
      %v570 = vmul.f32 %v542, %v565
      %v571 = vmul.f32 %v543, %v567
      %v572 = vlaneseq
      %v573 = vand.u32 %v572, 127
      %v574 = vadd.s32 %v573, 128
      %vm575 = vcmp.lt.s32.totalorder %v573, 0
      %v576 = vsub.s32 0, %v573
      %v577 = vsel %vm575, %v576, %v573
      %v578 = vshrl.u32 %v577, 4
      %v579 = vand.u32 %v577, 15
      %v580 = vsub.s32 0, %v579
      %v581 = vsel %vm575, %v580, %v579
      %vm582 = vcmp.lt.s32.totalorder %v574, 0
      %v583 = vsub.s32 0, %v574
      %v584 = vsel %vm582, %v583, %v574
      %v585 = vshrl.u32 %v584, 4
      %v586 = vand.u32 %v584, 15
      %v587 = vsub.s32 0, %v586
      %v588 = vsel %vm582, %v587, %v586
      %vm589 = vcmp.ne.s32.totalorder %v581, 0
      %vm590 = vcmp.ne.s32.totalorder %v588, 0
      %vm591 = vcmp.lt.s32.totalorder %v581, 0
      %vm592 = vcmp.lt.s32.totalorder %v588, 0
      %vm593 = vmand %vm591, %vm589
      %vm594 = vmand %vm592, %vm590
      %v595 = vadd.s32 %v581, 16
      %v596 = vadd.s32 %v588, 16
      %v597 = vsel %vm593, %v595, %v581
      %v598 = vsel %vm594, %v596, %v588
      %vm599 = vcmp.le.s32.totalorder %v597, 14
      %vm600 = vcmp.le.s32.totalorder %v598, 14
      %vm601 = vcmp.ge.s32.totalorder %v597, 1
      %vm602 = vcmp.ge.s32.totalorder %v598, 1
      %v603 = vsel %vm599, 1, 0
      %v604 = vsel %vm600, 1, 0
      %vm605 = vcmp.eq.s32.totalorder %v603, 1
      %vm606 = vcmp.eq.s32.totalorder %v604, 1
      %v607 = vsel %vm605, %v568, 0.0
      %v608 = vsel %vm606, %v569, 0.0
      %v609 = vsel %vm605, %v570, 0.0
      %v610 = vsel %vm606, %v571, 0.0
      %615 = vrot.lane.b32.xlu0 %v607, 17
      %v616 = vpop.permute.xlu0 %615
      %617 = vrot.lane.b32.xlu0 %v608, 17
      %v618 = vpop.permute.xlu0 %617
      %619 = vrot.lane.b32.xlu0 %v609, 17
      %v620 = vpop.permute.xlu0 %619
      %621 = vrot.lane.b32.xlu0 %v610, 17
      %v622 = vpop.permute.xlu0 %621
      %vm623 = vcmask 138240
      %v624 = vsel %vm623, %v616, %v618
      %v625 = vsel %vm623, %v620, %v622
      %v632 = vsel %vm623, 0.0, %v616
      %v633 = vsel %vm623, 0.0, %v620
      %v634 = vsel %vm623, %v618, 0.0
      %v635 = vsel %vm623, %v622, 0.0
      %v636 = vpack.c.bf16 %v633, %v632
      %v637 = vpack.c.bf16 %v625, %v624
      %v638 = vpack.c.bf16 %v635, %v634
      %643 = vrot.lane.b32.xlu0 %v568, 17
      %v644 = vpop.permute.xlu0 %643
      %645 = vrot.lane.b32.xlu0 %v569, 17
      %v646 = vpop.permute.xlu0 %645
      %647 = vrot.lane.b32.xlu0 %v570, 17
      %v648 = vpop.permute.xlu0 %647
      %649 = vrot.lane.b32.xlu0 %v571, 17
      %v650 = vpop.permute.xlu0 %649
      %v651 = vsel %vm623, %v644, %v646
      %v652 = vsel %vm623, %v648, %v650
      %v659 = vsel %vm623, 0.0, %v644
      %v660 = vsel %vm623, 0.0, %v648
      %v661 = vsel %vm623, %v646, 0.0
      %v662 = vsel %vm623, %v650, 0.0
      %v663 = vpack.c.bf16 %v660, %v659
      %v664 = vpack.c.bf16 %v652, %v651
      %v665 = vpack.c.bf16 %v662, %v661
      %v666 = vsel %vm601, 1, 0
      %v667 = vsel %vm602, 1, 0
      %vm668 = vcmp.eq.s32.totalorder %v666, 1
      %vm669 = vcmp.eq.s32.totalorder %v667, 1
      %v670 = vsel %vm668, %v568, 0.0
      %v671 = vsel %vm669, %v569, 0.0
      %v672 = vsel %vm668, %v570, 0.0
      %v673 = vsel %vm669, %v571, 0.0
      %678 = vrot.lane.b32.xlu0 %v670, 17
      %v679 = vpop.permute.xlu0 %678
      %680 = vrot.lane.b32.xlu0 %v671, 17
      %v681 = vpop.permute.xlu0 %680
      %682 = vrot.lane.b32.xlu0 %v672, 17
      %v683 = vpop.permute.xlu0 %682
      %684 = vrot.lane.b32.xlu0 %v673, 17
      %v685 = vpop.permute.xlu0 %684
      %v686 = vsel %vm623, %v679, %v681
      %v687 = vsel %vm623, %v683, %v685
      %v694 = vsel %vm623, 0.0, %v679
      %v695 = vsel %vm623, 0.0, %v683
      %v696 = vsel %vm623, %v681, 0.0
      %v697 = vsel %vm623, %v685, 0.0
      %v698 = vpack.c.bf16 %v695, %v694
      %v699 = vpack.c.bf16 %v687, %v686
      %v700 = vpack.c.bf16 %v697, %v696
      %704 = vrot.lane.b32.xlu0 %v663, 127
      %v705 = vpop.permute.xlu0 %704
      %706 = vrot.lane.b32.xlu0 %v664, 127
      %v707 = vpop.permute.xlu0 %706
      %708 = vrot.lane.b32.xlu0 %v665, 127
      %v709 = vpop.permute.xlu0 %708
      %vm710 = vcmask 1039360
      %v711 = vsel %vm710, %v705, %v707
      %v712 = vsel %vm710, %v707, %v709
      %718 = vrot.lane.b32.xlu0 %v698, 126
      %v719 = vpop.permute.xlu0 %718
      %720 = vrot.lane.b32.xlu0 %v699, 126
      %v721 = vpop.permute.xlu0 %720
      %722 = vrot.lane.b32.xlu0 %v700, 126
      %v723 = vpop.permute.xlu0 %722
      %vm724 = vcmask 1031168
      %v725 = vsel %vm724, %v719, %v721
      %v726 = vsel %vm724, %v721, %v723
      %732 = vrot.lane.b32.xlu0 %v636, 112
      %v733 = vpop.permute.xlu0 %732
      %734 = vrot.lane.b32.xlu0 %v637, 112
      %v735 = vpop.permute.xlu0 %734
      %736 = vrot.lane.b32.xlu0 %v638, 112
      %v737 = vpop.permute.xlu0 %736
      %vm738 = vcmask 916480
      %v739 = vsel %vm738, %v733, %v735
      %v740 = vsel %vm738, %v735, %v737
      %743 = vrot.lane.b32.xlu0 %v663, 111
      %v744 = vpop.permute.xlu0 %743
      %745 = vrot.lane.b32.xlu0 %v664, 111
      %v746 = vpop.permute.xlu0 %745
      %747 = vrot.lane.b32.xlu0 %v665, 111
      %v748 = vpop.permute.xlu0 %747
      %vm749 = vcmask 908288
      %v750 = vsel %vm749, %v744, %v746
      %v751 = vsel %vm749, %v746, %v748
      %754 = vrot.lane.b32.xlu0 %v698, 110
      %v755 = vpop.permute.xlu0 %754
      %756 = vrot.lane.b32.xlu0 %v699, 110
      %v757 = vpop.permute.xlu0 %756
      %758 = vrot.lane.b32.xlu0 %v700, 110
      %v759 = vpop.permute.xlu0 %758
      %vm760 = vcmask 900096
      %v761 = vsel %vm760, %v755, %v757
      %v762 = vsel %vm760, %v757, %v759
      %765 = vrot.lane.b32.xlu0 %v636, 96
      %v766 = vpop.permute.xlu0 %765
      %767 = vrot.lane.b32.xlu0 %v637, 96
      %v768 = vpop.permute.xlu0 %767
      %769 = vrot.lane.b32.xlu0 %v638, 96
      %v770 = vpop.permute.xlu0 %769
      %vm771 = vcmask 785408
      %v772 = vsel %vm771, %v766, %v768
      %v773 = vsel %vm771, %v768, %v770
      %776 = vrot.lane.b32.xlu0 %v663, 95
      %v777 = vpop.permute.xlu0 %776
      %778 = vrot.lane.b32.xlu0 %v664, 95
      %v779 = vpop.permute.xlu0 %778
      %780 = vrot.lane.b32.xlu0 %v665, 95
      %v781 = vpop.permute.xlu0 %780
      %vm782 = vcmask 777216
      %v783 = vsel %vm782, %v777, %v779
      %v784 = vsel %vm782, %v779, %v781
      %787 = vrot.lane.b32.xlu0 %v698, 94
      %v788 = vpop.permute.xlu0 %787
      %789 = vrot.lane.b32.xlu0 %v699, 94
      %v790 = vpop.permute.xlu0 %789
      %791 = vrot.lane.b32.xlu0 %v700, 94
      %v792 = vpop.permute.xlu0 %791
      %vm793 = vcmask 769024
      %v794 = vsel %vm793, %v788, %v790
      %v795 = vsel %vm793, %v790, %v792
      %v798 = vld [vmem:[%s4] sm:$0xff]
      %v799 = vld [vmem:[%s4 + $0x8] sm:$0xff]
      %v800 = vld [vmem:[%s5] sm:$0xff]
      %v801 = vld [vmem:[%s5 + $0x8] sm:$0xff]
      %803 = vset.pattern.permute.xlu0 0
      %804 = vperm.xlu0 %803, %v800
      %v805 = vpop.permute.xlu0 %804
      %808 = vset.pattern.permute.xlu0 0
      %809 = vperm.xlu0 %808, %v801
      %v810 = vpop.permute.xlu0 %809
      %v814 = vunpack.c.l.b16 %v798
      %v815 = vunpack.c.h.b16 %v798
      %v816 = vunpack.c.l.b16 %v799
      %v817 = vunpack.c.h.b16 %v799
      %v818 = vpack.c.b16 %v816, %v814
      %v819 = vpack.c.b16 %v817, %v815
      %vm821 = vcmask 130048
      %v823 = vsel %vm821, %v819, 0
      %825 = vmatprep.subr.bf16.mxu0 %v637
      %826 = vmatpush1.bf16.msra.mxu0 %v636
      %827 = vmatprep.subr.bf16.mxu0 %v712
      %828 = vmatpush1.bf16.msra.mxu0 %v711
      %829 = vmatprep.subr.bf16.mxu0 %v726
      %830 = vmatpush1.bf16.msra.mxu0 %v725
      %831 = vmatprep.subr.bf16.mxu0 %v740
      %832 = vmatpush1.bf16.msra.mxu0 %v739
      %833 = vmatprep.subr.bf16.mxu0 %v751
      %834 = vmatpush1.bf16.msra.mxu0 %v750
      %835 = vmatprep.subr.bf16.mxu0 %v762
      %836 = vmatpush1.bf16.msra.mxu0 %v761
      %837 = vmatprep.subr.bf16.mxu0 %v773
      %838 = vmatpush1.bf16.msra.mxu0 %v772
      %839 = vmatprep.subr.bf16.mxu0 %v784
      %840 = vmatpush1.bf16.msra.mxu0 %v783
      %841 = vmatprep.subr.bf16.mxu0 %v795
      %842 = vmatpush1.bf16.msra.mxu0 %v794
      %843 = vmatprep.subr.bf16.mxu0 0
      %844 = vmatpush1.bf16.msra.mxu0 0
      %845 = vmatprep.subr.bf16.mxu0 0
      %846 = vmatpush1.bf16.msra.mxu0 0
      %847 = vmatprep.subr.bf16.mxu0 0
      %848 = vmatpush1.bf16.msra.mxu0 0
      %849 = vmatprep.subr.bf16.mxu0 0
      %850 = vmatpush1.bf16.msra.mxu0 0
      %851 = vmatprep.subr.bf16.mxu0 0
      %852 = vmatpush1.bf16.msra.mxu0 0
      %853 = vmatprep.subr.bf16.mxu0 0
      %854 = vmatpush1.bf16.msra.mxu0 0
      %855 = vmatprep.subr.bf16.mxu0 0
      %856 = vmatpush1.bf16.msra.mxu0 0
      %857 = vmatprep.mubr.bf16.mxu0 %v823
      %858 = vmatmul.mubr.bf16.gmra.mrb[0].mxu0 %v818
      %v859 = vpop.f32.mrb[0].mxu0
      %v860 = vadd.f32 %v805, %v859
      %v861 = vpop.f32.mrb[0].mxu0
      %v862 = vadd.f32 %v805, %v861
      %v863 = vpop.f32.mrb[0].mxu0
      %v864 = vadd.f32 %v810, %v863
      %v865 = vpop.f32.mrb[0].mxu0
      %v866 = vadd.f32 %v810, %v865
      %867 = vdwg.mxu0
      %v868 = vld [vmem:[%s428] sm:$0xff]
      %v869 = vld [vmem:[%s428 + $0x8] sm:$0xff]
      %871 = vset.pattern.permute.xlu0 0
      %872 = vperm.xlu0 %871, %v868
      %v873 = vpop.permute.xlu0 %872
      %876 = vset.pattern.permute.xlu0 0
      %877 = vperm.xlu0 %876, %v869
      %v878 = vpop.permute.xlu0 %877
      %v880 = vadd.f32 %v860, %v873
      %v881 = vadd.f32 %v862, %v873
      %v882 = vadd.f32 %v864, %v878
      %v883 = vadd.f32 %v866, %v878
      %v884 = vld [vmem:[%s8] sm:$0xff]
      %v885 = vld [vmem:[%s8 + $0x8] sm:$0xff]
      %v886 = vld [vmem:[%s9] sm:$0xff]
      %v887 = vld [vmem:[%s9 + $0x8] sm:$0xff]
      %v888 = vld [vmem:[%s7] sm:$0xff]
      %v889 = vld [vmem:[%s7 + $0x8] sm:$0xff]
      %v890 = vadd.f32 %v880, %v881
      %891 = vadd.xlane.f32.xlu0 %v890
      %v892 = vpop.xlane.xlu0 %891
      %v893 = vadd.f32 %v882, %v883
      %894 = vadd.xlane.f32.xlu0 %v893
      %v895 = vpop.xlane.xlu0 %894
      %v896 = vmul.f32 %v892, %v888
      %v897 = vmul.f32 %v895, %v889
      %v898 = vsel %vm453, %v896, 0.0
      %v899 = vsel %vm453, %v897, 0.0
      %v900 = vadd.f32 %v898, %v899
      %v901 = vrot.slane %v900, 4
      %v902 = vadd.f32 %v900, %v901
      %v903 = vrot.slane %v902, 2
      %v904 = vadd.f32 %v902, %v903
      %v905 = vrot.slane %v904, 1
      %v906 = vadd.f32 %v904, %v905
      %v907 = vmul.f32 %v906, %v888
      %v908 = vmul.f32 %v906, %v889
      %v909 = vsel %vm453, %v907, 0.0
      %910 = vadd.xlane.f32.xlu0 %v909
      %v911 = vpop.xlane.xlu0 %910
      %v912 = vsel %vm453, %v908, 0.0
      %913 = vadd.xlane.f32.xlu0 %v912
      %v914 = vpop.xlane.xlu0 %913
      %v915 = vmul.f32 %v911, 0.0009765625
      %v916 = vmul.f32 %v914, 0.0009765625
      %v917 = vsub.f32 %v880, %v915
      %v918 = vsub.f32 %v881, %v915
      %v919 = vsub.f32 %v882, %v916
      %v920 = vsub.f32 %v883, %v916
      %v921 = vmul.f32 %v917, %v917
      %v922 = vmul.f32 %v918, %v918
      %v923 = vmul.f32 %v919, %v919
      %v924 = vmul.f32 %v920, %v920
      %v925 = vadd.f32 %v921, %v922
      %926 = vadd.xlane.f32.xlu0 %v925
      %v927 = vpop.xlane.xlu0 %926
      %v928 = vadd.f32 %v923, %v924
      %929 = vadd.xlane.f32.xlu0 %v928
      %v930 = vpop.xlane.xlu0 %929
      %v931 = vmul.f32 %v927, %v888
      %v932 = vmul.f32 %v930, %v889
      %v933 = vsel %vm453, %v931, 0.0
      %v934 = vsel %vm453, %v932, 0.0
      %v935 = vadd.f32 %v933, %v934
      %v936 = vrot.slane %v935, 4
      %v937 = vadd.f32 %v935, %v936
      %v938 = vrot.slane %v937, 2
      %v939 = vadd.f32 %v937, %v938
      %v940 = vrot.slane %v939, 1
      %v941 = vadd.f32 %v939, %v940
      %v942 = vmul.f32 %v941, %v888
      %v943 = vmul.f32 %v941, %v889
      %v944 = vsel %vm453, %v942, 0.0
      %945 = vadd.xlane.f32.xlu0 %v944
      %v946 = vpop.xlane.xlu0 %945
      %v947 = vsel %vm453, %v943, 0.0
      %948 = vadd.xlane.f32.xlu0 %v947
      %v949 = vpop.xlane.xlu0 %948
      %v950 = vmul.f32 %v946, 0.0009765625
      %v951 = vmul.f32 %v949, 0.0009765625
      %v952 = vadd.f32 %v950, 1e-05
      %v953 = vadd.f32 %v951, 1e-05
      %v954 = vrsqrt.pop %v952
      %v955 = vrsqrt.pop %v953
      %v956 = vmul.f32 %v917, %v954
      %v957 = vmul.f32 %v918, %v954
      %v958 = vmul.f32 %v919, %v955
      %v959 = vmul.f32 %v920, %v955
      %961 = vset.pattern.permute.xlu0 0
      %962 = vperm.xlu0 %961, %v884
      %v963 = vpop.permute.xlu0 %962
      %966 = vset.pattern.permute.xlu0 0
      %967 = vperm.xlu0 %966, %v885
      %v968 = vpop.permute.xlu0 %967
      %v970 = vmul.f32 %v956, %v963
      %v971 = vmul.f32 %v957, %v963
      %v972 = vmul.f32 %v958, %v968
      %v973 = vmul.f32 %v959, %v968
      %975 = vset.pattern.permute.xlu0 0
      %976 = vperm.xlu0 %975, %v886
      %v977 = vpop.permute.xlu0 %976
      %980 = vset.pattern.permute.xlu0 0
      %981 = vperm.xlu0 %980, %v887
      %v982 = vpop.permute.xlu0 %981
      %v984 = vadd.f32 %v970, %v977
      %v985 = vadd.f32 %v971, %v977
      %v986 = vadd.f32 %v972, %v982
      %v987 = vadd.f32 %v973, %v982
      %v988 = vxor.u32 %v984, 2147483648
      %v989 = vxor.u32 %v985, 2147483648
      %v990 = vxor.u32 %v986, 2147483648
      %v991 = vxor.u32 %v987, 2147483648
      %v992 = vmul.f32 %v988, 1.442695
      %v993 = vpow.pop %v992
      %v994 = vmul.f32 %v989, 1.442695
      %v995 = vpow.pop %v994
      %v996 = vmul.f32 %v990, 1.442695
      %v997 = vpow.pop %v996
      %v998 = vmul.f32 %v991, 1.442695
      %v999 = vpow.pop %v998
      %v1000 = vadd.f32 %v993, 1.0
      %v1001 = vadd.f32 %v995, 1.0
      %v1002 = vadd.f32 %v997, 1.0
      %v1003 = vadd.f32 %v999, 1.0
      %v1004 = vrcp.pop %v1000
      %v1005 = vmul.f32 1.0, %v1004
      %v1006 = vrcp.pop %v1001
      %v1007 = vmul.f32 1.0, %v1006
      %v1008 = vrcp.pop %v1002
      %v1009 = vmul.f32 1.0, %v1008
      %v1010 = vrcp.pop %v1003
      %v1011 = vmul.f32 1.0, %v1010
      %v1012 = vmul.f32 %v984, %v1005
      %v1013 = vmul.f32 %v985, %v1007
      %v1014 = vmul.f32 %v986, %v1009
      %v1015 = vmul.f32 %v987, %v1011
      %v1016 = vsel %vm605, %v1012, 0.0
      %v1017 = vsel %vm606, %v1013, 0.0
      %v1018 = vsel %vm605, %v1014, 0.0
      %v1019 = vsel %vm606, %v1015, 0.0
      %1024 = vrot.lane.b32.xlu0 %v1016, 17
      %v1025 = vpop.permute.xlu0 %1024
      %1026 = vrot.lane.b32.xlu0 %v1017, 17
      %v1027 = vpop.permute.xlu0 %1026
      %1028 = vrot.lane.b32.xlu0 %v1018, 17
      %v1029 = vpop.permute.xlu0 %1028
      %1030 = vrot.lane.b32.xlu0 %v1019, 17
      %v1031 = vpop.permute.xlu0 %1030
      %v1032 = vsel %vm623, %v1025, %v1027
      %v1033 = vsel %vm623, %v1029, %v1031
      %v1040 = vsel %vm623, 0.0, %v1025
      %v1041 = vsel %vm623, 0.0, %v1029
      %v1042 = vsel %vm623, %v1027, 0.0
      %v1043 = vsel %vm623, %v1031, 0.0
      %v1044 = vpack.c.bf16 %v1041, %v1040
      %v1045 = vpack.c.bf16 %v1033, %v1032
      %v1046 = vpack.c.bf16 %v1043, %v1042
      %1051 = vrot.lane.b32.xlu0 %v1012, 17
      %v1052 = vpop.permute.xlu0 %1051
      %1053 = vrot.lane.b32.xlu0 %v1013, 17
      %v1054 = vpop.permute.xlu0 %1053
      %1055 = vrot.lane.b32.xlu0 %v1014, 17
      %v1056 = vpop.permute.xlu0 %1055
      %1057 = vrot.lane.b32.xlu0 %v1015, 17
      %v1058 = vpop.permute.xlu0 %1057
      %v1059 = vsel %vm623, %v1052, %v1054
      %v1060 = vsel %vm623, %v1056, %v1058
      %v1067 = vsel %vm623, 0.0, %v1052
      %v1068 = vsel %vm623, 0.0, %v1056
      %v1069 = vsel %vm623, %v1054, 0.0
      %v1070 = vsel %vm623, %v1058, 0.0
      %v1071 = vpack.c.bf16 %v1068, %v1067
      %v1072 = vpack.c.bf16 %v1060, %v1059
      %v1073 = vpack.c.bf16 %v1070, %v1069
      %v1074 = vsel %vm668, %v1012, 0.0
      %v1075 = vsel %vm669, %v1013, 0.0
      %v1076 = vsel %vm668, %v1014, 0.0
      %v1077 = vsel %vm669, %v1015, 0.0
      %1082 = vrot.lane.b32.xlu0 %v1074, 17
      %v1083 = vpop.permute.xlu0 %1082
      %1084 = vrot.lane.b32.xlu0 %v1075, 17
      %v1085 = vpop.permute.xlu0 %1084
      %1086 = vrot.lane.b32.xlu0 %v1076, 17
      %v1087 = vpop.permute.xlu0 %1086
      %1088 = vrot.lane.b32.xlu0 %v1077, 17
      %v1089 = vpop.permute.xlu0 %1088
      %v1090 = vsel %vm623, %v1083, %v1085
      %v1091 = vsel %vm623, %v1087, %v1089
      %v1098 = vsel %vm623, 0.0, %v1083
      %v1099 = vsel %vm623, 0.0, %v1087
      %v1100 = vsel %vm623, %v1085, 0.0
      %v1101 = vsel %vm623, %v1089, 0.0
      %v1102 = vpack.c.bf16 %v1099, %v1098
      %v1103 = vpack.c.bf16 %v1091, %v1090
      %v1104 = vpack.c.bf16 %v1101, %v1100
      %v1105 = vpack.c.bf16 %v437, %v435
      %v1106 = vpack.c.bf16 %v438, %v436
      %1110 = vrot.lane.b32.xlu0 %v1071, 127
      %v1111 = vpop.permute.xlu0 %1110
      %1112 = vrot.lane.b32.xlu0 %v1072, 127
      %v1113 = vpop.permute.xlu0 %1112
      %1114 = vrot.lane.b32.xlu0 %v1073, 127
      %v1115 = vpop.permute.xlu0 %1114
      %v1116 = vsel %vm710, %v1111, %v1113
      %v1117 = vsel %vm710, %v1113, %v1115
      %1123 = vrot.lane.b32.xlu0 %v1102, 126
      %v1124 = vpop.permute.xlu0 %1123
      %1125 = vrot.lane.b32.xlu0 %v1103, 126
      %v1126 = vpop.permute.xlu0 %1125
      %1127 = vrot.lane.b32.xlu0 %v1104, 126
      %v1128 = vpop.permute.xlu0 %1127
      %v1129 = vsel %vm724, %v1124, %v1126
      %v1130 = vsel %vm724, %v1126, %v1128
      %1136 = vrot.lane.b32.xlu0 %v1044, 112
      %v1137 = vpop.permute.xlu0 %1136
      %1138 = vrot.lane.b32.xlu0 %v1045, 112
      %v1139 = vpop.permute.xlu0 %1138
      %1140 = vrot.lane.b32.xlu0 %v1046, 112
      %v1141 = vpop.permute.xlu0 %1140
      %v1142 = vsel %vm738, %v1137, %v1139
      %v1143 = vsel %vm738, %v1139, %v1141
      %1146 = vrot.lane.b32.xlu0 %v1071, 111
      %v1147 = vpop.permute.xlu0 %1146
      %1148 = vrot.lane.b32.xlu0 %v1072, 111
      %v1149 = vpop.permute.xlu0 %1148
      %1150 = vrot.lane.b32.xlu0 %v1073, 111
      %v1151 = vpop.permute.xlu0 %1150
      %v1152 = vsel %vm749, %v1147, %v1149
      %v1153 = vsel %vm749, %v1149, %v1151
      %1156 = vrot.lane.b32.xlu0 %v1102, 110
      %v1157 = vpop.permute.xlu0 %1156
      %1158 = vrot.lane.b32.xlu0 %v1103, 110
      %v1159 = vpop.permute.xlu0 %1158
      %1160 = vrot.lane.b32.xlu0 %v1104, 110
      %v1161 = vpop.permute.xlu0 %1160
      %v1162 = vsel %vm760, %v1157, %v1159
      %v1163 = vsel %vm760, %v1159, %v1161
      %1166 = vrot.lane.b32.xlu0 %v1044, 96
      %v1167 = vpop.permute.xlu0 %1166
      %1168 = vrot.lane.b32.xlu0 %v1045, 96
      %v1169 = vpop.permute.xlu0 %1168
      %1170 = vrot.lane.b32.xlu0 %v1046, 96
      %v1171 = vpop.permute.xlu0 %1170
      %v1172 = vsel %vm771, %v1167, %v1169
      %v1173 = vsel %vm771, %v1169, %v1171
      %1176 = vrot.lane.b32.xlu0 %v1071, 95
      %v1177 = vpop.permute.xlu0 %1176
      %1178 = vrot.lane.b32.xlu0 %v1072, 95
      %v1179 = vpop.permute.xlu0 %1178
      %1180 = vrot.lane.b32.xlu0 %v1073, 95
      %v1181 = vpop.permute.xlu0 %1180
      %v1182 = vsel %vm782, %v1177, %v1179
      %v1183 = vsel %vm782, %v1179, %v1181
      %1186 = vrot.lane.b32.xlu0 %v1102, 94
      %v1187 = vpop.permute.xlu0 %1186
      %1188 = vrot.lane.b32.xlu0 %v1103, 94
      %v1189 = vpop.permute.xlu0 %1188
      %1190 = vrot.lane.b32.xlu0 %v1104, 94
      %v1191 = vpop.permute.xlu0 %1190
      %v1192 = vsel %vm793, %v1187, %v1189
      %v1193 = vsel %vm793, %v1189, %v1191
      %v1196 = vld [vmem:[%s10] sm:$0xff]
      %v1197 = vld [vmem:[%s10 + $0x8] sm:$0xff]
      %v1198 = vld [vmem:[%s11] sm:$0xff]
      %v1199 = vld [vmem:[%s11 + $0x8] sm:$0xff]
      %1201 = vset.pattern.permute.xlu0 0
      %1202 = vperm.xlu0 %1201, %v1198
      %v1203 = vpop.permute.xlu0 %1202
      %1206 = vset.pattern.permute.xlu0 0
      %1207 = vperm.xlu0 %1206, %v1199
      %v1208 = vpop.permute.xlu0 %1207
      %v1212 = vunpack.c.l.b16 %v1196
      %v1213 = vunpack.c.h.b16 %v1196
      %v1214 = vunpack.c.l.b16 %v1197
      %v1215 = vunpack.c.h.b16 %v1197
      %v1216 = vpack.c.b16 %v1214, %v1212
      %v1217 = vpack.c.b16 %v1215, %v1213
      %vm1219 = vcmask 261120
      %v1221 = vsel %vm1219, %v1217, 0
      %1223 = vmatprep.subr.bf16.mxu0 %v1045
      %1224 = vmatpush1.bf16.msra.mxu0 %v1044
      %1225 = vmatprep.subr.bf16.mxu0 %v1117
      %1226 = vmatpush1.bf16.msra.mxu0 %v1116
      %1227 = vmatprep.subr.bf16.mxu0 %v1130
      %1228 = vmatpush1.bf16.msra.mxu0 %v1129
      %1229 = vmatprep.subr.bf16.mxu0 %v1143
      %1230 = vmatpush1.bf16.msra.mxu0 %v1142
      %1231 = vmatprep.subr.bf16.mxu0 %v1153
      %1232 = vmatpush1.bf16.msra.mxu0 %v1152
      %1233 = vmatprep.subr.bf16.mxu0 %v1163
      %1234 = vmatpush1.bf16.msra.mxu0 %v1162
      %1235 = vmatprep.subr.bf16.mxu0 %v1173
      %1236 = vmatpush1.bf16.msra.mxu0 %v1172
      %1237 = vmatprep.subr.bf16.mxu0 %v1183
      %1238 = vmatpush1.bf16.msra.mxu0 %v1182
      %1239 = vmatprep.subr.bf16.mxu0 %v1193
      %1240 = vmatpush1.bf16.msra.mxu0 %v1192
      %1241 = vmatprep.subr.bf16.mxu0 %v1106
      %1242 = vmatpush1.bf16.msra.mxu0 %v1105
      %1243 = vmatprep.subr.bf16.mxu0 0
      %1244 = vmatpush1.bf16.msra.mxu0 0
      %1245 = vmatprep.subr.bf16.mxu0 0
      %1246 = vmatpush1.bf16.msra.mxu0 0
      %1247 = vmatprep.subr.bf16.mxu0 0
      %1248 = vmatpush1.bf16.msra.mxu0 0
      %1249 = vmatprep.subr.bf16.mxu0 0
      %1250 = vmatpush1.bf16.msra.mxu0 0
      %1251 = vmatprep.subr.bf16.mxu0 0
      %1252 = vmatpush1.bf16.msra.mxu0 0
      %1253 = vmatprep.subr.bf16.mxu0 0
      %1254 = vmatpush1.bf16.msra.mxu0 0
      %1255 = vmatprep.mubr.bf16.mxu0 %v1221
      %1256 = vmatmul.mubr.bf16.gmra.mrb[0].mxu0 %v1216
      %v1257 = vpop.f32.mrb[0].mxu0
      %v1258 = vadd.f32 %v1203, %v1257
      %v1259 = vpop.f32.mrb[0].mxu0
      %v1260 = vadd.f32 %v1203, %v1259
      %v1261 = vpop.f32.mrb[0].mxu0
      %v1262 = vadd.f32 %v1208, %v1261
      %v1263 = vpop.f32.mrb[0].mxu0
      %v1264 = vadd.f32 %v1208, %v1263
      %1265 = vdwg.mxu0
      %1266 = vst [vmem:[%s433] sm:$0xff] %v1258
      %1267 = vst [vmem:[%s433 + $0x8] sm:$0xff] %v1260
      %1268 = vst [vmem:[%s433 + $0x10] sm:$0xff] %v1262
      %1269 = vst [vmem:[%s433 + $0x18] sm:$0xff] %v1264
      %p1270 = scmp.lt.s32.totalorder %s23, 1
      %s1271 = scalar_select %p1270, %s23, 1
      %s1272 = smul.addr %s1271, 4
      %s1273 = smul.addr %s1272, 8
      %s1274 = scalar_lea.vmem %s12, %s1273
      // Predicated region
      $region69: #{resnet_block_forward.1} parent=67 // pred_check
        %p1275 = pneg %p303
      $region70: #{resnet_block_forward.1} parent=67 // pred_check_branch
        %1277 = sbr.rel (%p1275) target = $region72
      $region71: #{resnet_block_forward.1} parent=67 // pred_region
        _
      $region72: #{resnet_block_forward.1} parent=67 // pred_fallthru
        _
    $region68: #{resnet_block_forward.1} parent=5 // pred_fallthru
      _
    %p1278 = scmp.le.s32.totalorder 2, %s18
    // Predicated region
    $region73: #{resnet_block_forward.1} parent=5 // pred_check
      %p1279 = pneg %p1278
    $region74: #{resnet_block_forward.1} parent=5 // pred_check_branch
      %1281 = sbr.rel (%p1279) target = $region76
    $region75: #{resnet_block_forward.1} parent=5 // pred_region
      %s1282 = ssub.s32 %s18, 2
      // Predicated region
      $region77: #{resnet_block_forward.1} parent=75 // pred_check
        %p1283 = pneg %p309
      $region78: #{resnet_block_forward.1} parent=75 // pred_check_branch
        %1285 = sbr.rel (%p1283) target = $region80
      $region79: #{resnet_block_forward.1} parent=75 // pred_region
        %p1286 = scmp.lt.s32.totalorder %s24, 1
        %s1287 = scalar_select %p1286, %s24, 1
        %s1288 = smul.addr %s1287, 4
        %s1289 = smul.addr %s1288, 8
        %s1290 = scalar_lea.vmem %s12, %s1289
      $region80: #{resnet_block_forward.1} parent=75 // pred_fallthru
        _
    $region76: #{resnet_block_forward.1} parent=5 // pred_fallthru
      _
  $region6: #{resnet_block_forward.1} parent=0 // loop_footer
    %s22 = sadd.s32 1, %s18
  $region7: #{resnet_block_forward.1} parent=0 // loop_footer_branch
    %17 = sbr.rel target = $region3
  $region8: #{resnet_block_forward.1} parent=0 // loop_exit
    _

</llo_original>
